<compile_context>
chip_gen: v5e
topology: v5e:2x2
jax: 0.10.0
libtpu: 0.0.40
codegen_flags: <defaults>
</compile_context>

<pallas_src>
import functools

import jax
import jax.numpy as jnp
from jax import lax
from jax.experimental import pallas as pl


# ----------------------------------------------------------------------------
# Fused kernel: vision (pool folded into weight) -> GRU (all streams) -> cosine
# ----------------------------------------------------------------------------
def hearer_fused_kernel(
    img_ref,                  # (NS*B, C*S)  stream-major stacked images, lane-dense
    x_ref,                    # (T*B, V)     shared token embeddings, row t*B+b
    m_ref,                    # (T, NS*B, 1) length mask, pre-replicated across streams
    wv_ref, bv_ref,           # (C*S, H), (1, H)  vision weight with 1/S pooling folded in
    wih_ref,                  # (V, 3H) fused input->hidden weight (gate order r|z|n)
    whh_ref,                  # (H, 3H) fused hidden->hidden weight
    bx_ref,                   # (1, 3H) = [b_ir+b_hr | b_iz+b_hz | b_in]
    bnh_ref,                  # (1, H)  = b_hn (stays inside r * (.))
    out_ref,                  # (NO, B) cosine sims, row s = cos(before, stream s+1)
    *, T, B, NS, H,
):
    NO = NS - 1
    eps = 1e-8

    # ---- Vision stand-in: mean-pool + linear as ONE MXU matmul ---------------
    h = (jnp.dot(img_ref[...], wv_ref[...], preferred_element_type=jnp.float32)
         + bv_ref[...])                                                # (NS*B, H)

    # ---- Fused input projection for the whole sequence (shared by streams) ---
    xp = (jnp.dot(x_ref[...], wih_ref[...], preferred_element_type=jnp.float32)
          + bx_ref[...])                                               # (T*B, 3H)

    # Hoist stream replication out of the recurrence: one concat for all T.
    xp3 = jnp.concatenate([xp.reshape(T, B, 3 * H)] * NS, axis=1)      # (T, NS*B, 3H)
    xrz_all = xp3[:, :, :2 * H]                                        # (T, NS*B, 2H)
    xn_all = xp3[:, :, 2 * H:]                                         # (T, NS*B, H)
    mask = m_ref[...]                                                  # (T, NS*B, 1)

    whh = whh_ref[...]
    bnh = jnp.broadcast_to(bnh_ref[...], (NS * B, H))                  # hoisted broadcast

    # ---- GRU recurrence (PyTorch gate order r, z, n); T small & static -------
    # TODO(synk): switch to lax.fori_loop with pl.ds slicing if T grows.
    for t in range(T):
        hp = jnp.dot(h, whh, preferred_element_type=jnp.float32)      # (NS*B, 3H)
        rz = jax.nn.sigmoid(xrz_all[t] + hp[:, :2 * H])
        r = rz[:, :H]
        z = rz[:, H:]
        n = jnp.tanh(xn_all[t] + r * (hp[:, 2 * H:] + bnh))
        h_new = (1.0 - z) * n + z * h
        # pack_padded_sequence semantics: hidden freezes past each length.
        h = jnp.where(mask[t] > 0.0, h_new, h)

    # ---- cosine(e_before, [e_positive, e_neg_0, ...]) ------------------------
    eb = h[0:B, :].reshape(1, B, H)                                    # before
    eo = h[B:, :].reshape(NO, B, H)                                    # candidates
    dots = jnp.sum(eo * eb, axis=-1)                                   # (NO, B)
    nb = jnp.maximum(jnp.sqrt(jnp.sum(eb * eb, axis=-1)), eps)         # (1, B), once
    no_ = jnp.maximum(jnp.sqrt(jnp.sum(eo * eo, axis=-1)), eps)        # (NO, B)
    out_ref[...] = (dots / (nb * no_)).astype(out_ref.dtype)


# ----------------------------------------------------------------------------
# Wrapper: glue (embedding gather, layout plumbing, weight prep) + pallas_call
# ----------------------------------------------------------------------------
def hearer_forward(params, sample):
    tokens = sample["action_tokens"]                   # (B, T) int32
    lengths = sample["lengths"]                        # (B,)   int32
    B, T = tokens.shape
    V = params["wih"].shape[0]
    H = params["whh"].shape[0]
    C = params["wv"].shape[0]

    imgs = [sample["before"], sample["positive"]] + list(sample["negatives"])
    NS = len(imgs)
    NO = NS - 1
    S = imgs[0].shape[2] * imgs[0].shape[3]

    # Stream-major stack, flattened to lane-dense 2D (no sublane-padded C dim).
    img_all = jnp.concatenate(imgs, axis=0).reshape(NS * B, C * S)     # (NS*B, C*S)

    # Fold the spatial mean-pool into the vision weight: row c*S+s = wv[c] / S.
    wv_eff = jnp.repeat(params["wv"] / S, S, axis=0)                   # (C*S, H)

    # Embedding lookup (glue gather; stand-in for GloVe).
    emb = params["emb_table"][tokens]                                  # (B, T, V)
    x2d = jnp.transpose(emb, (1, 0, 2)).reshape(T * B, V)              # row t*B+b

    # Length mask, pre-replicated across streams wrapper-side: (T, NS*B, 1).
    mask = (jnp.arange(T)[None, :] < lengths[:, None]).astype(jnp.float32)   # (B, T)
    m_all = jnp.tile(mask.T[:, None, :, None], (1, NS, 1, 1)).reshape(T, NS * B, 1)

    # Fused GRU biases: b_hr / b_hz folded into the input projection bias;
    # b_hn kept separate (it lives inside r * (.)).
    bih, bhh = params["bih"], params["bhh"]
    bx = jnp.concatenate([bih[:, :2 * H] + bhh[:, :2 * H], bih[:, 2 * H:]], axis=1)
    bnh = bhh[:, 2 * H:]

    kernel = functools.partial(hearer_fused_kernel, T=T, B=B, NS=NS, H=H)
    sims = pl.pallas_call(
        kernel,
        out_shape=jax.ShapeDtypeStruct((NO, B), jnp.float32),
        # Footprint is well under the default scoped VMEM limit; no override.
        # TODO(synk): add grid + BlockSpecs (streams/batch) at real image sizes
        #             for DMA double-buffering and v7x megacore sharding.
    )(img_all, x2d, m_all, wv_eff, params["bv"],
      params["wih"], params["whh"], bx, bnh)

    # Layout plumbing only: (NO, B) -> (B, NO) = [p_dist, n_dist_0, ...].
    return sims.T


# ----------------------------------------------------------------------------
# Pure-JAX reference (for correctness check)
# ----------------------------------------------------------------------------
def _gru_ref(x_btv, lengths, h0, wih, whh, bih, bhh):
    B, T, V = x_btv.shape
    H = h0.shape[1]
    mask = (jnp.arange(T)[None, :] < lengths[:, None]).astype(jnp.float32)

    def step(h, inp):
        x_t, m_t = inp
        xp = x_t @ wih + bih[0]
        hp = h @ whh + bhh[0]
        r = jax.nn.sigmoid(xp[:, :H] + hp[:, :H])
        z = jax.nn.sigmoid(xp[:, H:2 * H] + hp[:, H:2 * H])
        n = jnp.tanh(xp[:, 2 * H:] + r * hp[:, 2 * H:])
        h_new = (1 - z) * n + z * h
        return m_t * h_new + (1 - m_t) * h, None

    xs = (jnp.transpose(x_btv, (1, 0, 2)), jnp.transpose(mask)[:, :, None])
    h, _ = lax.scan(step, h0, xs)
    return h


def _hearer_ref(params, sample):
    tokens, lengths = sample["action_tokens"], sample["lengths"]
    emb = params["emb_table"][tokens]

    def vm(img):
        pooled = jnp.mean(jnp.transpose(img, (0, 2, 3, 1)), axis=(1, 2))
        return pooled @ params["wv"] + params["bv"][0]

    def lm(h0):
        return _gru_ref(emb, lengths, h0, params["wih"], params["whh"],
                        params["bih"], params["bhh"])

    def cos(a, b):
        eps = 1e-8
        na = jnp.maximum(jnp.linalg.norm(a, axis=-1), eps)
        nb = jnp.maximum(jnp.linalg.norm(b, axis=-1), eps)
        return jnp.sum(a * b, axis=-1) / (na * nb)

    e_b = lm(vm(sample["before"]))
    e_p = lm(vm(sample["positive"]))
    e_n = [lm(vm(neg)) for neg in sample["negatives"]]
    cols = [cos(e_b, e_p)[:, None]] + [cos(e_b, en)[:, None] for en in e_n]
    return jnp.concatenate(cols, axis=1)


# ----------------------------------------------------------------------------
if __name__ == "__main__":
    B, T, VEC, HID = 2, 8, 32, 32          # scaled-down: GloVe 300 -> 32, hidden 256 -> 32
    C, IMG, VOCAB, N_NEG = 4, 16, 64, 2

    key = jax.random.PRNGKey(0)
    ks = jax.random.split(key, 12)

    params = {
        "emb_table": 0.1 * jax.random.normal(ks[0], (VOCAB, VEC), jnp.float32),
        "wih": 0.2 * jax.random.normal(ks[1], (VEC, 3 * HID), jnp.float32),
        "whh": 0.2 * jax.random.normal(ks[2], (HID, 3 * HID), jnp.float32),
        "bih": 0.1 * jax.random.normal(ks[3], (1, 3 * HID), jnp.float32),
        "bhh": 0.1 * jax.random.normal(ks[4], (1, 3 * HID), jnp.float32),
        "wv": 0.2 * jax.random.normal(ks[5], (C, HID), jnp.float32),
        "bv": 0.1 * jax.random.normal(ks[6], (1, HID), jnp.float32),
    }

    sample = {
        "action_tokens": jax.random.randint(ks[7], (B, T), 0, VOCAB, jnp.int32),
        "lengths": jnp.array([T, T - 3], jnp.int32),
        "before": jax.random.normal(ks[8], (B, C, IMG, IMG), jnp.float32),
        "positive": jax.random.normal(ks[9], (B, C, IMG, IMG), jnp.float32),
        "negatives": [
            jax.random.normal(ks[10], (B, C, IMG, IMG), jnp.float32),
            jax.random.normal(ks[11], (B, C, IMG, IMG), jnp.float32),
        ],
    }

    out = hearer_forward(params, sample)
    out = jax.block_until_ready(out)
    assert out.shape == (B, 1 + N_NEG), out.shape

    ref = jax.block_until_ready(_hearer_ref(params, sample))
    assert jnp.allclose(out, ref, atol=5e-4, rtol=5e-4), (out, ref)

    print("KERNEL_OK")
</pallas_src>

<mosaic_0001>
module attributes {stable_mosaic.version = 11 : i64} {
  func.func @hearer_fused_kernel(%arg0: memref<8x1024xf32, #tpu.memory_space<vmem>>, %arg1: memref<16x32xf32, #tpu.memory_space<vmem>>, %arg2: memref<8x8x1xf32, #tpu.memory_space<vmem>>, %arg3: memref<1024x32xf32, #tpu.memory_space<vmem>>, %arg4: memref<1x32xf32, #tpu.memory_space<vmem>>, %arg5: memref<32x96xf32, #tpu.memory_space<vmem>>, %arg6: memref<32x96xf32, #tpu.memory_space<vmem>>, %arg7: memref<1x96xf32, #tpu.memory_space<vmem>>, %arg8: memref<1x32xf32, #tpu.memory_space<vmem>>, %arg9: memref<3x2xf32, #tpu.memory_space<vmem>>) attributes {dimension_semantics = [], scalar_prefetch = 0 : i64, scratch_operands = 0 : i64, tpu.core_type = #tpu.core_type<tc>} {
    %c0 = arith.constant 0 : index
    %c0_0 = arith.constant 0 : index
    %0 = vector.load %arg0[%c0, %c0_0] : memref<8x1024xf32, #tpu.memory_space<vmem>>, vector<8x1024xf32>
    %c0_1 = arith.constant 0 : index
    %c0_2 = arith.constant 0 : index
    %1 = vector.load %arg3[%c0_1, %c0_2] : memref<1024x32xf32, #tpu.memory_space<vmem>>, vector<1024x32xf32>
    %cst = arith.constant dense<0.000000e+00> : vector<8x32xf32>
    %2 = tpu.matmul %0, %1, %cst {dimension_numbers = #tpu.dot_dimension_numbers<[1], [0], [0], [1], [0, 0, 1, 1], [], []>} : vector<8x1024xf32>, vector<1024x32xf32>, vector<8x32xf32> -> vector<8x32xf32>
    %c0_3 = arith.constant 0 : index
    %c0_4 = arith.constant 0 : index
    %3 = vector.load %arg4[%c0_3, %c0_4] : memref<1x32xf32, #tpu.memory_space<vmem>>, vector<1x32xf32>
    %4 = vector.broadcast %3 : vector<1x32xf32> to vector<8x32xf32>
    %5 = arith.addf %2, %4 : vector<8x32xf32>
    %c0_5 = arith.constant 0 : index
    %c0_6 = arith.constant 0 : index
    %6 = vector.load %arg1[%c0_5, %c0_6] : memref<16x32xf32, #tpu.memory_space<vmem>>, vector<16x32xf32>
    %c0_7 = arith.constant 0 : index
    %c0_8 = arith.constant 0 : index
    %7 = vector.load %arg5[%c0_7, %c0_8] : memref<32x96xf32, #tpu.memory_space<vmem>>, vector<32x96xf32>
    %cst_9 = arith.constant dense<0.000000e+00> : vector<16x96xf32>
    %8 = tpu.matmul %6, %7, %cst_9 {dimension_numbers = #tpu.dot_dimension_numbers<[1], [0], [0], [1], [0, 0, 1, 1], [], []>} : vector<16x32xf32>, vector<32x96xf32>, vector<16x96xf32> -> vector<16x96xf32>
    %c0_10 = arith.constant 0 : index
    %c0_11 = arith.constant 0 : index
    %9 = vector.load %arg7[%c0_10, %c0_11] : memref<1x96xf32, #tpu.memory_space<vmem>>, vector<1x96xf32>
    %10 = vector.broadcast %9 : vector<1x96xf32> to vector<16x96xf32>
    %11 = arith.addf %8, %10 : vector<16x96xf32>
    %12 = vector.shape_cast %11 : vector<16x96xf32> to vector<8x2x96xf32>
    %13 = tpu.concatenate %12, %12, %12, %12 in 1 : vector<8x2x96xf32>, vector<8x2x96xf32>, vector<8x2x96xf32>, vector<8x2x96xf32> -> vector<8x8x96xf32>
    %14 = vector.extract_strided_slice %13 {offsets = [0, 0, 0], sizes = [8, 8, 64], strides = [1, 1, 1]} : vector<8x8x96xf32> to vector<8x8x64xf32>
    %15 = vector.extract_strided_slice %13 {offsets = [0, 0, 64], sizes = [8, 8, 32], strides = [1, 1, 1]} : vector<8x8x96xf32> to vector<8x8x32xf32>
    %c0_12 = arith.constant 0 : index
    %c0_13 = arith.constant 0 : index
    %c0_14 = arith.constant 0 : index
    %16 = vector.load %arg2[%c0_12, %c0_13, %c0_14] : memref<8x8x1xf32, #tpu.memory_space<vmem>>, vector<8x8x1xf32>
    %c0_15 = arith.constant 0 : index
    %c0_16 = arith.constant 0 : index
    %17 = vector.load %arg6[%c0_15, %c0_16] : memref<32x96xf32, #tpu.memory_space<vmem>>, vector<32x96xf32>
    %c0_17 = arith.constant 0 : index
    %c0_18 = arith.constant 0 : index
    %18 = vector.load %arg8[%c0_17, %c0_18] : memref<1x32xf32, #tpu.memory_space<vmem>>, vector<1x32xf32>
    %19 = vector.shape_cast %18 : vector<1x32xf32> to vector<1x32xf32>
    %20 = vector.broadcast %19 : vector<1x32xf32> to vector<8x32xf32>
    %cst_19 = arith.constant dense<0.000000e+00> : vector<8x96xf32>
    %21 = tpu.matmul %5, %17, %cst_19 {dimension_numbers = #tpu.dot_dimension_numbers<[1], [0], [0], [1], [0, 0, 1, 1], [], []>} : vector<8x32xf32>, vector<32x96xf32>, vector<8x96xf32> -> vector<8x96xf32>
    %22 = vector.extract_strided_slice %14 {offsets = [0, 0, 0], sizes = [1, 8, 64], strides = [1, 1, 1]} : vector<8x8x64xf32> to vector<1x8x64xf32>
    %23 = vector.shape_cast %22 : vector<1x8x64xf32> to vector<8x64xf32>
    %24 = vector.extract_strided_slice %21 {offsets = [0, 0], sizes = [8, 64], strides = [1, 1]} : vector<8x96xf32> to vector<8x64xf32>
    %25 = arith.addf %23, %24 : vector<8x64xf32>
    %26 = arith.negf %25 : vector<8x64xf32>
    %27 = math.exp %26 : vector<8x64xf32>
    %cst_20 = arith.constant 1.000000e+00 : f32
    %28 = vector.broadcast %cst_20 : f32 to vector<8x64xf32>
    %29 = arith.addf %28, %27 : vector<8x64xf32>
    %30 = arith.divf %28, %29 : vector<8x64xf32>
    %31 = vector.extract_strided_slice %30 {offsets = [0, 0], sizes = [8, 32], strides = [1, 1]} : vector<8x64xf32> to vector<8x32xf32>
    %32 = vector.extract_strided_slice %30 {offsets = [0, 32], sizes = [8, 32], strides = [1, 1]} : vector<8x64xf32> to vector<8x32xf32>
    %33 = vector.extract_strided_slice %15 {offsets = [0, 0, 0], sizes = [1, 8, 32], strides = [1, 1, 1]} : vector<8x8x32xf32> to vector<1x8x32xf32>
    %34 = vector.shape_cast %33 : vector<1x8x32xf32> to vector<8x32xf32>
    %35 = vector.extract_strided_slice %21 {offsets = [0, 64], sizes = [8, 32], strides = [1, 1]} : vector<8x96xf32> to vector<8x32xf32>
    %36 = arith.addf %35, %20 : vector<8x32xf32>
    %37 = arith.mulf %31, %36 : vector<8x32xf32>
    %38 = arith.addf %34, %37 : vector<8x32xf32>
    %39 = math.tanh %38 : vector<8x32xf32>
    %cst_21 = arith.constant 1.000000e+00 : f32
    %40 = vector.broadcast %cst_21 : f32 to vector<8x32xf32>
    %41 = arith.subf %40, %32 : vector<8x32xf32>
    %42 = arith.mulf %41, %39 : vector<8x32xf32>
    %43 = arith.mulf %32, %5 : vector<8x32xf32>
    %44 = arith.addf %42, %43 : vector<8x32xf32>
    %45 = vector.extract_strided_slice %16 {offsets = [0, 0, 0], sizes = [1, 8, 1], strides = [1, 1, 1]} : vector<8x8x1xf32> to vector<1x8x1xf32>
    %46 = vector.shape_cast %45 : vector<1x8x1xf32> to vector<8x1xf32>
    %cst_22 = arith.constant 0.000000e+00 : f32
    %47 = vector.broadcast %cst_22 : f32 to vector<8x1xf32>
    %48 = arith.cmpf ogt, %46, %47 : vector<8x1xf32>
    %49 = vector.shape_cast %48 : vector<8x1xi1> to vector<8x1xi1>
    %50 = vector.broadcast %49 : vector<8x1xi1> to vector<8x32xi1>
    %51 = arith.select %50, %44, %5 : vector<8x32xi1>, vector<8x32xf32>
    %cst_23 = arith.constant dense<0.000000e+00> : vector<8x96xf32>
    %52 = tpu.matmul %51, %17, %cst_23 {dimension_numbers = #tpu.dot_dimension_numbers<[1], [0], [0], [1], [0, 0, 1, 1], [], []>} : vector<8x32xf32>, vector<32x96xf32>, vector<8x96xf32> -> vector<8x96xf32>
    %53 = vector.extract_strided_slice %14 {offsets = [1, 0, 0], sizes = [1, 8, 64], strides = [1, 1, 1]} : vector<8x8x64xf32> to vector<1x8x64xf32>
    %54 = vector.shape_cast %53 : vector<1x8x64xf32> to vector<8x64xf32>
    %55 = vector.extract_strided_slice %52 {offsets = [0, 0], sizes = [8, 64], strides = [1, 1]} : vector<8x96xf32> to vector<8x64xf32>
    %56 = arith.addf %54, %55 : vector<8x64xf32>
    %57 = arith.negf %56 : vector<8x64xf32>
    %58 = math.exp %57 : vector<8x64xf32>
    %cst_24 = arith.constant 1.000000e+00 : f32
    %59 = vector.broadcast %cst_24 : f32 to vector<8x64xf32>
    %60 = arith.addf %59, %58 : vector<8x64xf32>
    %61 = arith.divf %59, %60 : vector<8x64xf32>
    %62 = vector.extract_strided_slice %61 {offsets = [0, 0], sizes = [8, 32], strides = [1, 1]} : vector<8x64xf32> to vector<8x32xf32>
    %63 = vector.extract_strided_slice %61 {offsets = [0, 32], sizes = [8, 32], strides = [1, 1]} : vector<8x64xf32> to vector<8x32xf32>
    %64 = vector.extract_strided_slice %15 {offsets = [1, 0, 0], sizes = [1, 8, 32], strides = [1, 1, 1]} : vector<8x8x32xf32> to vector<1x8x32xf32>
    %65 = vector.shape_cast %64 : vector<1x8x32xf32> to vector<8x32xf32>
    %66 = vector.extract_strided_slice %52 {offsets = [0, 64], sizes = [8, 32], strides = [1, 1]} : vector<8x96xf32> to vector<8x32xf32>
    %67 = arith.addf %66, %20 : vector<8x32xf32>
    %68 = arith.mulf %62, %67 : vector<8x32xf32>
    %69 = arith.addf %65, %68 : vector<8x32xf32>
    %70 = math.tanh %69 : vector<8x32xf32>
    %cst_25 = arith.constant 1.000000e+00 : f32
    %71 = vector.broadcast %cst_25 : f32 to vector<8x32xf32>
    %72 = arith.subf %71, %63 : vector<8x32xf32>
    %73 = arith.mulf %72, %70 : vector<8x32xf32>
    %74 = arith.mulf %63, %51 : vector<8x32xf32>
    %75 = arith.addf %73, %74 : vector<8x32xf32>
    %76 = vector.extract_strided_slice %16 {offsets = [1, 0, 0], sizes = [1, 8, 1], strides = [1, 1, 1]} : vector<8x8x1xf32> to vector<1x8x1xf32>
    %77 = vector.shape_cast %76 : vector<1x8x1xf32> to vector<8x1xf32>
    %cst_26 = arith.constant 0.000000e+00 : f32
    %78 = vector.broadcast %cst_26 : f32 to vector<8x1xf32>
    %79 = arith.cmpf ogt, %77, %78 : vector<8x1xf32>
    %80 = vector.shape_cast %79 : vector<8x1xi1> to vector<8x1xi1>
    %81 = vector.broadcast %80 : vector<8x1xi1> to vector<8x32xi1>
    %82 = arith.select %81, %75, %51 : vector<8x32xi1>, vector<8x32xf32>
    %cst_27 = arith.constant dense<0.000000e+00> : vector<8x96xf32>
    %83 = tpu.matmul %82, %17, %cst_27 {dimension_numbers = #tpu.dot_dimension_numbers<[1], [0], [0], [1], [0, 0, 1, 1], [], []>} : vector<8x32xf32>, vector<32x96xf32>, vector<8x96xf32> -> vector<8x96xf32>
    %84 = vector.extract_strided_slice %14 {offsets = [2, 0, 0], sizes = [1, 8, 64], strides = [1, 1, 1]} : vector<8x8x64xf32> to vector<1x8x64xf32>
    %85 = vector.shape_cast %84 : vector<1x8x64xf32> to vector<8x64xf32>
    %86 = vector.extract_strided_slice %83 {offsets = [0, 0], sizes = [8, 64], strides = [1, 1]} : vector<8x96xf32> to vector<8x64xf32>
    %87 = arith.addf %85, %86 : vector<8x64xf32>
    %88 = arith.negf %87 : vector<8x64xf32>
    %89 = math.exp %88 : vector<8x64xf32>
    %cst_28 = arith.constant 1.000000e+00 : f32
    %90 = vector.broadcast %cst_28 : f32 to vector<8x64xf32>
    %91 = arith.addf %90, %89 : vector<8x64xf32>
    %92 = arith.divf %90, %91 : vector<8x64xf32>
    %93 = vector.extract_strided_slice %92 {offsets = [0, 0], sizes = [8, 32], strides = [1, 1]} : vector<8x64xf32> to vector<8x32xf32>
    %94 = vector.extract_strided_slice %92 {offsets = [0, 32], sizes = [8, 32], strides = [1, 1]} : vector<8x64xf32> to vector<8x32xf32>
    %95 = vector.extract_strided_slice %15 {offsets = [2, 0, 0], sizes = [1, 8, 32], strides = [1, 1, 1]} : vector<8x8x32xf32> to vector<1x8x32xf32>
    %96 = vector.shape_cast %95 : vector<1x8x32xf32> to vector<8x32xf32>
    %97 = vector.extract_strided_slice %83 {offsets = [0, 64], sizes = [8, 32], strides = [1, 1]} : vector<8x96xf32> to vector<8x32xf32>
    %98 = arith.addf %97, %20 : vector<8x32xf32>
    %99 = arith.mulf %93, %98 : vector<8x32xf32>
    %100 = arith.addf %96, %99 : vector<8x32xf32>
    %101 = math.tanh %100 : vector<8x32xf32>
    %cst_29 = arith.constant 1.000000e+00 : f32
    %102 = vector.broadcast %cst_29 : f32 to vector<8x32xf32>
    %103 = arith.subf %102, %94 : vector<8x32xf32>
    %104 = arith.mulf %103, %101 : vector<8x32xf32>
    %105 = arith.mulf %94, %82 : vector<8x32xf32>
    %106 = arith.addf %104, %105 : vector<8x32xf32>
    %107 = vector.extract_strided_slice %16 {offsets = [2, 0, 0], sizes = [1, 8, 1], strides = [1, 1, 1]} : vector<8x8x1xf32> to vector<1x8x1xf32>
    %108 = vector.shape_cast %107 : vector<1x8x1xf32> to vector<8x1xf32>
    %cst_30 = arith.constant 0.000000e+00 : f32
    %109 = vector.broadcast %cst_30 : f32 to vector<8x1xf32>
    %110 = arith.cmpf ogt, %108, %109 : vector<8x1xf32>
    %111 = vector.shape_cast %110 : vector<8x1xi1> to vector<8x1xi1>
    %112 = vector.broadcast %111 : vector<8x1xi1> to vector<8x32xi1>
    %113 = arith.select %112, %106, %82 : vector<8x32xi1>, vector<8x32xf32>
    %cst_31 = arith.constant dense<0.000000e+00> : vector<8x96xf32>
    %114 = tpu.matmul %113, %17, %cst_31 {dimension_numbers = #tpu.dot_dimension_numbers<[1], [0], [0], [1], [0, 0, 1, 1], [], []>} : vector<8x32xf32>, vector<32x96xf32>, vector<8x96xf32> -> vector<8x96xf32>
    %115 = vector.extract_strided_slice %14 {offsets = [3, 0, 0], sizes = [1, 8, 64], strides = [1, 1, 1]} : vector<8x8x64xf32> to vector<1x8x64xf32>
    %116 = vector.shape_cast %115 : vector<1x8x64xf32> to vector<8x64xf32>
    %117 = vector.extract_strided_slice %114 {offsets = [0, 0], sizes = [8, 64], strides = [1, 1]} : vector<8x96xf32> to vector<8x64xf32>
    %118 = arith.addf %116, %117 : vector<8x64xf32>
    %119 = arith.negf %118 : vector<8x64xf32>
    %120 = math.exp %119 : vector<8x64xf32>
    %cst_32 = arith.constant 1.000000e+00 : f32
    %121 = vector.broadcast %cst_32 : f32 to vector<8x64xf32>
    %122 = arith.addf %121, %120 : vector<8x64xf32>
    %123 = arith.divf %121, %122 : vector<8x64xf32>
    %124 = vector.extract_strided_slice %123 {offsets = [0, 0], sizes = [8, 32], strides = [1, 1]} : vector<8x64xf32> to vector<8x32xf32>
    %125 = vector.extract_strided_slice %123 {offsets = [0, 32], sizes = [8, 32], strides = [1, 1]} : vector<8x64xf32> to vector<8x32xf32>
    %126 = vector.extract_strided_slice %15 {offsets = [3, 0, 0], sizes = [1, 8, 32], strides = [1, 1, 1]} : vector<8x8x32xf32> to vector<1x8x32xf32>
    %127 = vector.shape_cast %126 : vector<1x8x32xf32> to vector<8x32xf32>
    %128 = vector.extract_strided_slice %114 {offsets = [0, 64], sizes = [8, 32], strides = [1, 1]} : vector<8x96xf32> to vector<8x32xf32>
    %129 = arith.addf %128, %20 : vector<8x32xf32>
    %130 = arith.mulf %124, %129 : vector<8x32xf32>
    %131 = arith.addf %127, %130 : vector<8x32xf32>
    %132 = math.tanh %131 : vector<8x32xf32>
    %cst_33 = arith.constant 1.000000e+00 : f32
    %133 = vector.broadcast %cst_33 : f32 to vector<8x32xf32>
    %134 = arith.subf %133, %125 : vector<8x32xf32>
    %135 = arith.mulf %134, %132 : vector<8x32xf32>
    %136 = arith.mulf %125, %113 : vector<8x32xf32>
    %137 = arith.addf %135, %136 : vector<8x32xf32>
    %138 = vector.extract_strided_slice %16 {offsets = [3, 0, 0], sizes = [1, 8, 1], strides = [1, 1, 1]} : vector<8x8x1xf32> to vector<1x8x1xf32>
    %139 = vector.shape_cast %138 : vector<1x8x1xf32> to vector<8x1xf32>
    %cst_34 = arith.constant 0.000000e+00 : f32
    %140 = vector.broadcast %cst_34 : f32 to vector<8x1xf32>
    %141 = arith.cmpf ogt, %139, %140 : vector<8x1xf32>
    %142 = vector.shape_cast %141 : vector<8x1xi1> to vector<8x1xi1>
    %143 = vector.broadcast %142 : vector<8x1xi1> to vector<8x32xi1>
    %144 = arith.select %143, %137, %113 : vector<8x32xi1>, vector<8x32xf32>
    %cst_35 = arith.constant dense<0.000000e+00> : vector<8x96xf32>
    %145 = tpu.matmul %144, %17, %cst_35 {dimension_numbers = #tpu.dot_dimension_numbers<[1], [0], [0], [1], [0, 0, 1, 1], [], []>} : vector<8x32xf32>, vector<32x96xf32>, vector<8x96xf32> -> vector<8x96xf32>
    %146 = vector.extract_strided_slice %14 {offsets = [4, 0, 0], sizes = [1, 8, 64], strides = [1, 1, 1]} : vector<8x8x64xf32> to vector<1x8x64xf32>
    %147 = vector.shape_cast %146 : vector<1x8x64xf32> to vector<8x64xf32>
    %148 = vector.extract_strided_slice %145 {offsets = [0, 0], sizes = [8, 64], strides = [1, 1]} : vector<8x96xf32> to vector<8x64xf32>
    %149 = arith.addf %147, %148 : vector<8x64xf32>
    %150 = arith.negf %149 : vector<8x64xf32>
    %151 = math.exp %150 : vector<8x64xf32>
    %cst_36 = arith.constant 1.000000e+00 : f32
    %152 = vector.broadcast %cst_36 : f32 to vector<8x64xf32>
    %153 = arith.addf %152, %151 : vector<8x64xf32>
    %154 = arith.divf %152, %153 : vector<8x64xf32>
    %155 = vector.extract_strided_slice %154 {offsets = [0, 0], sizes = [8, 32], strides = [1, 1]} : vector<8x64xf32> to vector<8x32xf32>
    %156 = vector.extract_strided_slice %154 {offsets = [0, 32], sizes = [8, 32], strides = [1, 1]} : vector<8x64xf32> to vector<8x32xf32>
    %157 = vector.extract_strided_slice %15 {offsets = [4, 0, 0], sizes = [1, 8, 32], strides = [1, 1, 1]} : vector<8x8x32xf32> to vector<1x8x32xf32>
    %158 = vector.shape_cast %157 : vector<1x8x32xf32> to vector<8x32xf32>
    %159 = vector.extract_strided_slice %145 {offsets = [0, 64], sizes = [8, 32], strides = [1, 1]} : vector<8x96xf32> to vector<8x32xf32>
    %160 = arith.addf %159, %20 : vector<8x32xf32>
    %161 = arith.mulf %155, %160 : vector<8x32xf32>
    %162 = arith.addf %158, %161 : vector<8x32xf32>
    %163 = math.tanh %162 : vector<8x32xf32>
    %cst_37 = arith.constant 1.000000e+00 : f32
    %164 = vector.broadcast %cst_37 : f32 to vector<8x32xf32>
    %165 = arith.subf %164, %156 : vector<8x32xf32>
    %166 = arith.mulf %165, %163 : vector<8x32xf32>
    %167 = arith.mulf %156, %144 : vector<8x32xf32>
    %168 = arith.addf %166, %167 : vector<8x32xf32>
    %169 = vector.extract_strided_slice %16 {offsets = [4, 0, 0], sizes = [1, 8, 1], strides = [1, 1, 1]} : vector<8x8x1xf32> to vector<1x8x1xf32>
    %170 = vector.shape_cast %169 : vector<1x8x1xf32> to vector<8x1xf32>
    %cst_38 = arith.constant 0.000000e+00 : f32
    %171 = vector.broadcast %cst_38 : f32 to vector<8x1xf32>
    %172 = arith.cmpf ogt, %170, %171 : vector<8x1xf32>
    %173 = vector.shape_cast %172 : vector<8x1xi1> to vector<8x1xi1>
    %174 = vector.broadcast %173 : vector<8x1xi1> to vector<8x32xi1>
    %175 = arith.select %174, %168, %144 : vector<8x32xi1>, vector<8x32xf32>
    %cst_39 = arith.constant dense<0.000000e+00> : vector<8x96xf32>
    %176 = tpu.matmul %175, %17, %cst_39 {dimension_numbers = #tpu.dot_dimension_numbers<[1], [0], [0], [1], [0, 0, 1, 1], [], []>} : vector<8x32xf32>, vector<32x96xf32>, vector<8x96xf32> -> vector<8x96xf32>
    %177 = vector.extract_strided_slice %14 {offsets = [5, 0, 0], sizes = [1, 8, 64], strides = [1, 1, 1]} : vector<8x8x64xf32> to vector<1x8x64xf32>
    %178 = vector.shape_cast %177 : vector<1x8x64xf32> to vector<8x64xf32>
    %179 = vector.extract_strided_slice %176 {offsets = [0, 0], sizes = [8, 64], strides = [1, 1]} : vector<8x96xf32> to vector<8x64xf32>
    %180 = arith.addf %178, %179 : vector<8x64xf32>
    %181 = arith.negf %180 : vector<8x64xf32>
    %182 = math.exp %181 : vector<8x64xf32>
    %cst_40 = arith.constant 1.000000e+00 : f32
    %183 = vector.broadcast %cst_40 : f32 to vector<8x64xf32>
    %184 = arith.addf %183, %182 : vector<8x64xf32>
    %185 = arith.divf %183, %184 : vector<8x64xf32>
    %186 = vector.extract_strided_slice %185 {offsets = [0, 0], sizes = [8, 32], strides = [1, 1]} : vector<8x64xf32> to vector<8x32xf32>
    %187 = vector.extract_strided_slice %185 {offsets = [0, 32], sizes = [8, 32], strides = [1, 1]} : vector<8x64xf32> to vector<8x32xf32>
    %188 = vector.extract_strided_slice %15 {offsets = [5, 0, 0], sizes = [1, 8, 32], strides = [1, 1, 1]} : vector<8x8x32xf32> to vector<1x8x32xf32>
    %189 = vector.shape_cast %188 : vector<1x8x32xf32> to vector<8x32xf32>
    %190 = vector.extract_strided_slice %176 {offsets = [0, 64], sizes = [8, 32], strides = [1, 1]} : vector<8x96xf32> to vector<8x32xf32>
    %191 = arith.addf %190, %20 : vector<8x32xf32>
    %192 = arith.mulf %186, %191 : vector<8x32xf32>
    %193 = arith.addf %189, %192 : vector<8x32xf32>
    %194 = math.tanh %193 : vector<8x32xf32>
    %cst_41 = arith.constant 1.000000e+00 : f32
    %195 = vector.broadcast %cst_41 : f32 to vector<8x32xf32>
    %196 = arith.subf %195, %187 : vector<8x32xf32>
    %197 = arith.mulf %196, %194 : vector<8x32xf32>
    %198 = arith.mulf %187, %175 : vector<8x32xf32>
    %199 = arith.addf %197, %198 : vector<8x32xf32>
    %200 = vector.extract_strided_slice %16 {offsets = [5, 0, 0], sizes = [1, 8, 1], strides = [1, 1, 1]} : vector<8x8x1xf32> to vector<1x8x1xf32>
    %201 = vector.shape_cast %200 : vector<1x8x1xf32> to vector<8x1xf32>
    %cst_42 = arith.constant 0.000000e+00 : f32
    %202 = vector.broadcast %cst_42 : f32 to vector<8x1xf32>
    %203 = arith.cmpf ogt, %201, %202 : vector<8x1xf32>
    %204 = vector.shape_cast %203 : vector<8x1xi1> to vector<8x1xi1>
    %205 = vector.broadcast %204 : vector<8x1xi1> to vector<8x32xi1>
    %206 = arith.select %205, %199, %175 : vector<8x32xi1>, vector<8x32xf32>
    %cst_43 = arith.constant dense<0.000000e+00> : vector<8x96xf32>
    %207 = tpu.matmul %206, %17, %cst_43 {dimension_numbers = #tpu.dot_dimension_numbers<[1], [0], [0], [1], [0, 0, 1, 1], [], []>} : vector<8x32xf32>, vector<32x96xf32>, vector<8x96xf32> -> vector<8x96xf32>
    %208 = vector.extract_strided_slice %14 {offsets = [6, 0, 0], sizes = [1, 8, 64], strides = [1, 1, 1]} : vector<8x8x64xf32> to vector<1x8x64xf32>
    %209 = vector.shape_cast %208 : vector<1x8x64xf32> to vector<8x64xf32>
    %210 = vector.extract_strided_slice %207 {offsets = [0, 0], sizes = [8, 64], strides = [1, 1]} : vector<8x96xf32> to vector<8x64xf32>
    %211 = arith.addf %209, %210 : vector<8x64xf32>
    %212 = arith.negf %211 : vector<8x64xf32>
    %213 = math.exp %212 : vector<8x64xf32>
    %cst_44 = arith.constant 1.000000e+00 : f32
    %214 = vector.broadcast %cst_44 : f32 to vector<8x64xf32>
    %215 = arith.addf %214, %213 : vector<8x64xf32>
    %216 = arith.divf %214, %215 : vector<8x64xf32>
    %217 = vector.extract_strided_slice %216 {offsets = [0, 0], sizes = [8, 32], strides = [1, 1]} : vector<8x64xf32> to vector<8x32xf32>
    %218 = vector.extract_strided_slice %216 {offsets = [0, 32], sizes = [8, 32], strides = [1, 1]} : vector<8x64xf32> to vector<8x32xf32>
    %219 = vector.extract_strided_slice %15 {offsets = [6, 0, 0], sizes = [1, 8, 32], strides = [1, 1, 1]} : vector<8x8x32xf32> to vector<1x8x32xf32>
    %220 = vector.shape_cast %219 : vector<1x8x32xf32> to vector<8x32xf32>
    %221 = vector.extract_strided_slice %207 {offsets = [0, 64], sizes = [8, 32], strides = [1, 1]} : vector<8x96xf32> to vector<8x32xf32>
    %222 = arith.addf %221, %20 : vector<8x32xf32>
    %223 = arith.mulf %217, %222 : vector<8x32xf32>
    %224 = arith.addf %220, %223 : vector<8x32xf32>
    %225 = math.tanh %224 : vector<8x32xf32>
    %cst_45 = arith.constant 1.000000e+00 : f32
    %226 = vector.broadcast %cst_45 : f32 to vector<8x32xf32>
    %227 = arith.subf %226, %218 : vector<8x32xf32>
    %228 = arith.mulf %227, %225 : vector<8x32xf32>
    %229 = arith.mulf %218, %206 : vector<8x32xf32>
    %230 = arith.addf %228, %229 : vector<8x32xf32>
    %231 = vector.extract_strided_slice %16 {offsets = [6, 0, 0], sizes = [1, 8, 1], strides = [1, 1, 1]} : vector<8x8x1xf32> to vector<1x8x1xf32>
    %232 = vector.shape_cast %231 : vector<1x8x1xf32> to vector<8x1xf32>
    %cst_46 = arith.constant 0.000000e+00 : f32
    %233 = vector.broadcast %cst_46 : f32 to vector<8x1xf32>
    %234 = arith.cmpf ogt, %232, %233 : vector<8x1xf32>
    %235 = vector.shape_cast %234 : vector<8x1xi1> to vector<8x1xi1>
    %236 = vector.broadcast %235 : vector<8x1xi1> to vector<8x32xi1>
    %237 = arith.select %236, %230, %206 : vector<8x32xi1>, vector<8x32xf32>
    %cst_47 = arith.constant dense<0.000000e+00> : vector<8x96xf32>
    %238 = tpu.matmul %237, %17, %cst_47 {dimension_numbers = #tpu.dot_dimension_numbers<[1], [0], [0], [1], [0, 0, 1, 1], [], []>} : vector<8x32xf32>, vector<32x96xf32>, vector<8x96xf32> -> vector<8x96xf32>
    %239 = vector.extract_strided_slice %14 {offsets = [7, 0, 0], sizes = [1, 8, 64], strides = [1, 1, 1]} : vector<8x8x64xf32> to vector<1x8x64xf32>
    %240 = vector.shape_cast %239 : vector<1x8x64xf32> to vector<8x64xf32>
    %241 = vector.extract_strided_slice %238 {offsets = [0, 0], sizes = [8, 64], strides = [1, 1]} : vector<8x96xf32> to vector<8x64xf32>
    %242 = arith.addf %240, %241 : vector<8x64xf32>
    %243 = arith.negf %242 : vector<8x64xf32>
    %244 = math.exp %243 : vector<8x64xf32>
    %cst_48 = arith.constant 1.000000e+00 : f32
    %245 = vector.broadcast %cst_48 : f32 to vector<8x64xf32>
    %246 = arith.addf %245, %244 : vector<8x64xf32>
    %247 = arith.divf %245, %246 : vector<8x64xf32>
    %248 = vector.extract_strided_slice %247 {offsets = [0, 0], sizes = [8, 32], strides = [1, 1]} : vector<8x64xf32> to vector<8x32xf32>
    %249 = vector.extract_strided_slice %247 {offsets = [0, 32], sizes = [8, 32], strides = [1, 1]} : vector<8x64xf32> to vector<8x32xf32>
    %250 = vector.extract_strided_slice %15 {offsets = [7, 0, 0], sizes = [1, 8, 32], strides = [1, 1, 1]} : vector<8x8x32xf32> to vector<1x8x32xf32>
    %251 = vector.shape_cast %250 : vector<1x8x32xf32> to vector<8x32xf32>
    %252 = vector.extract_strided_slice %238 {offsets = [0, 64], sizes = [8, 32], strides = [1, 1]} : vector<8x96xf32> to vector<8x32xf32>
    %253 = arith.addf %252, %20 : vector<8x32xf32>
    %254 = arith.mulf %248, %253 : vector<8x32xf32>
    %255 = arith.addf %251, %254 : vector<8x32xf32>
    %256 = math.tanh %255 : vector<8x32xf32>
    %cst_49 = arith.constant 1.000000e+00 : f32
    %257 = vector.broadcast %cst_49 : f32 to vector<8x32xf32>
    %258 = arith.subf %257, %249 : vector<8x32xf32>
    %259 = arith.mulf %258, %256 : vector<8x32xf32>
    %260 = arith.mulf %249, %237 : vector<8x32xf32>
    %261 = arith.addf %259, %260 : vector<8x32xf32>
    %262 = vector.extract_strided_slice %16 {offsets = [7, 0, 0], sizes = [1, 8, 1], strides = [1, 1, 1]} : vector<8x8x1xf32> to vector<1x8x1xf32>
    %263 = vector.shape_cast %262 : vector<1x8x1xf32> to vector<8x1xf32>
    %cst_50 = arith.constant 0.000000e+00 : f32
    %264 = vector.broadcast %cst_50 : f32 to vector<8x1xf32>
    %265 = arith.cmpf ogt, %263, %264 : vector<8x1xf32>
    %266 = vector.shape_cast %265 : vector<8x1xi1> to vector<8x1xi1>
    %267 = vector.broadcast %266 : vector<8x1xi1> to vector<8x32xi1>
    %268 = arith.select %267, %261, %237 : vector<8x32xi1>, vector<8x32xf32>
    %269 = vector.extract_strided_slice %268 {offsets = [0, 0], sizes = [2, 32], strides = [1, 1]} : vector<8x32xf32> to vector<2x32xf32>
    %270 = vector.shape_cast %269 : vector<2x32xf32> to vector<1x2x32xf32>
    %271 = vector.extract_strided_slice %268 {offsets = [2, 0], sizes = [6, 32], strides = [1, 1]} : vector<8x32xf32> to vector<6x32xf32>
    %272 = vector.shape_cast %271 : vector<6x32xf32> to vector<3x2x32xf32>
    %273 = vector.broadcast %270 : vector<1x2x32xf32> to vector<3x2x32xf32>
    %274 = arith.mulf %272, %273 : vector<3x2x32xf32>
    %cst_51 = arith.constant dense<0.000000e+00> : vector<3x2xf32>
    %275 = vector.multi_reduction <add>, %274, %cst_51 [2] : vector<3x2x32xf32> to vector<3x2xf32>
    %276 = arith.mulf %270, %270 : vector<1x2x32xf32>
    %cst_52 = arith.constant dense<0.000000e+00> : vector<1x2xf32>
    %277 = vector.multi_reduction <add>, %276, %cst_52 [2] : vector<1x2x32xf32> to vector<1x2xf32>
    %278 = math.sqrt %277 : vector<1x2xf32>
    %cst_53 = arith.constant 9.99999993E-9 : f32
    %279 = vector.broadcast %cst_53 : f32 to vector<1x2xf32>
    %280 = arith.maximumf %278, %279 : vector<1x2xf32>
    %281 = arith.mulf %272, %272 : vector<3x2x32xf32>
    %cst_54 = arith.constant dense<0.000000e+00> : vector<3x2xf32>
    %282 = vector.multi_reduction <add>, %281, %cst_54 [2] : vector<3x2x32xf32> to vector<3x2xf32>
    %283 = math.sqrt %282 : vector<3x2xf32>
    %cst_55 = arith.constant 9.99999993E-9 : f32
    %284 = vector.broadcast %cst_55 : f32 to vector<3x2xf32>
    %285 = arith.maximumf %283, %284 : vector<3x2xf32>
    %286 = vector.broadcast %280 : vector<1x2xf32> to vector<3x2xf32>
    %287 = arith.mulf %286, %285 : vector<3x2xf32>
    %288 = arith.divf %275, %287 : vector<3x2xf32>
    %c0_56 = arith.constant 0 : index
    %c0_57 = arith.constant 0 : index
    %289 = vector.load %arg9[%c0_56, %c0_57] : memref<3x2xf32, #tpu.memory_space<vmem>>, vector<3x2xf32>
    tpu.vector_store %arg9[%c0_56, %c0_57], %288 {strides = array<i32>} : memref<3x2xf32, #tpu.memory_space<vmem>>, vector<3x2xf32>,
    return
  }
}

</mosaic_0001>

<llo_original>
// kernel: tpu_custom_call.1
$region0: #{tpu_custom_call.1}
  #allocation0 [shape = 'u32[]', space=smem, size = 0x4, offset = 0x4, fixed_abs, tag = 'smem constant byte address 0x4 - core index']
  #allocation1 [shape = 'u32[72,128]{1,0:T(1,128)}', space=vmem, size = 0x9000, scoped, tag = 'internal scratch']
  %s0 = inlined_call_operand.vmem [shape: f32[8,1024], index: 0, kind: input, shape index: {}]
  %s1 = inlined_call_operand.vmem [shape: f32[16,32], index: 1, kind: input, shape index: {}]
  %s2 = inlined_call_operand.vmem [shape: f32[8,8,1], index: 2, kind: input, shape index: {}]
  %s3 = inlined_call_operand.vmem [shape: f32[1024,32], index: 3, kind: input, shape index: {}]
  %s4 = inlined_call_operand.vmem [shape: f32[1,32], index: 4, kind: input, shape index: {}]
  %s5 = inlined_call_operand.vmem [shape: f32[32,96], index: 5, kind: input, shape index: {}]
  %s6 = inlined_call_operand.vmem [shape: f32[32,96], index: 6, kind: input, shape index: {}]
  %s7 = inlined_call_operand.vmem [shape: f32[1,96], index: 7, kind: input, shape index: {}]
  %s8 = inlined_call_operand.vmem [shape: f32[1,32], index: 8, kind: input, shape index: {}]
  %s9 = inlined_call_operand.vmem [shape: f32[3,2], index: 9, kind: output, shape index: {}]
  %s10 = sld [smem:[#allocation0]]
  $region46: #{tpu_custom_call.1} parent=0
    _
  %s12 = ssub.s32 1, %s10
  %s13 = scalar_select 0, %s12, %s10
  // Predicated region
  $region2: #{tpu_custom_call.1} parent=0 // pred_check
    _
  $region3: #{tpu_custom_call.1} parent=0 // pred_check_branch
    %15 = sbr.rel (0) target = $region5
  $region4: #{tpu_custom_call.1} parent=0 // pred_region
    _
  $region5: #{tpu_custom_call.1} parent=0 // pred_fallthru
    _
  // Predicated region
  $region6: #{tpu_custom_call.1} parent=0 // pred_check
    _
  $region7: #{tpu_custom_call.1} parent=0 // pred_check_branch
    %17 = sbr.rel (0) target = $region9
  $region8: #{tpu_custom_call.1} parent=0 // pred_region
    _
  $region9: #{tpu_custom_call.1} parent=0 // pred_fallthru
    _
  // Predicated region
  $region10: #{tpu_custom_call.1} parent=0 // pred_check
    _
  $region11: #{tpu_custom_call.1} parent=0 // pred_check_branch
    %19 = sbr.rel (0) target = $region13
  $region12: #{tpu_custom_call.1} parent=0 // pred_region
    _
  $region13: #{tpu_custom_call.1} parent=0 // pred_fallthru
    _
  // Predicated region
  $region14: #{tpu_custom_call.1} parent=0 // pred_check
    _
  $region15: #{tpu_custom_call.1} parent=0 // pred_check_branch
    %21 = sbr.rel (0) target = $region17
  $region16: #{tpu_custom_call.1} parent=0 // pred_region
    _
  $region17: #{tpu_custom_call.1} parent=0 // pred_fallthru
    _
  // Predicated region
  $region18: #{tpu_custom_call.1} parent=0 // pred_check
    _
  $region19: #{tpu_custom_call.1} parent=0 // pred_check_branch
    %23 = sbr.rel (0) target = $region21
  $region20: #{tpu_custom_call.1} parent=0 // pred_region
    _
  $region21: #{tpu_custom_call.1} parent=0 // pred_fallthru
    _
  // Predicated region
  $region22: #{tpu_custom_call.1} parent=0 // pred_check
    _
  $region23: #{tpu_custom_call.1} parent=0 // pred_check_branch
    %25 = sbr.rel (0) target = $region25
  $region24: #{tpu_custom_call.1} parent=0 // pred_region
    _
  $region25: #{tpu_custom_call.1} parent=0 // pred_fallthru
    _
  // Predicated region
  $region26: #{tpu_custom_call.1} parent=0 // pred_check
    _
  $region27: #{tpu_custom_call.1} parent=0 // pred_check_branch
    %27 = sbr.rel (0) target = $region29
  $region28: #{tpu_custom_call.1} parent=0 // pred_region
    _
  $region29: #{tpu_custom_call.1} parent=0 // pred_fallthru
    _
  // Predicated region
  $region30: #{tpu_custom_call.1} parent=0 // pred_check
    _
  $region31: #{tpu_custom_call.1} parent=0 // pred_check_branch
    %29 = sbr.rel (0) target = $region33
  $region32: #{tpu_custom_call.1} parent=0 // pred_region
    _
  $region33: #{tpu_custom_call.1} parent=0 // pred_fallthru
    _
  // Predicated region
  $region34: #{tpu_custom_call.1} parent=0 // pred_check
    _
  $region35: #{tpu_custom_call.1} parent=0 // pred_check_branch
    %31 = sbr.rel (0) target = $region37
  $region36: #{tpu_custom_call.1} parent=0 // pred_region
    _
  $region37: #{tpu_custom_call.1} parent=0 // pred_fallthru
    _
  %v32 = vld [vmem:[%s0] sm:$0xff]
  %v33 = vld [vmem:[%s0 + $0x8] sm:$0xff]
  %v34 = vld [vmem:[%s0 + $0x10] sm:$0xff]
  %v35 = vld [vmem:[%s0 + $0x18] sm:$0xff]
  %v36 = vld [vmem:[%s0 + $0x20] sm:$0xff]
  %v37 = vld [vmem:[%s0 + $0x28] sm:$0xff]
  %v38 = vld [vmem:[%s0 + $0x30] sm:$0xff]
  %v39 = vld [vmem:[%s0 + $0x38] sm:$0xff]
  %v40 = vld [vmem:[%s3] sm:$0xff]
  %v41 = vld [vmem:[%s3 + $0x8] sm:$0xff]
  %v42 = vld [vmem:[%s3 + $0x10] sm:$0xff]
  %v43 = vld [vmem:[%s3 + $0x18] sm:$0xff]
  %v44 = vld [vmem:[%s3 + $0x20] sm:$0xff]
  %v45 = vld [vmem:[%s3 + $0x28] sm:$0xff]
  %v46 = vld [vmem:[%s3 + $0x30] sm:$0xff]
  %v47 = vld [vmem:[%s3 + $0x38] sm:$0xff]
  %v48 = vld [vmem:[%s3 + $0x40] sm:$0xff]
  %v49 = vld [vmem:[%s3 + $0x48] sm:$0xff]
  %v50 = vld [vmem:[%s3 + $0x50] sm:$0xff]
  %v51 = vld [vmem:[%s3 + $0x58] sm:$0xff]
  %v52 = vld [vmem:[%s3 + $0x60] sm:$0xff]
  %v53 = vld [vmem:[%s3 + $0x68] sm:$0xff]
  %v54 = vld [vmem:[%s3 + $0x70] sm:$0xff]
  %v55 = vld [vmem:[%s3 + $0x78] sm:$0xff]
  %v56 = vld [vmem:[%s3 + $0x80] sm:$0xff]
  %v57 = vld [vmem:[%s3 + $0x88] sm:$0xff]
  %v58 = vld [vmem:[%s3 + $0x90] sm:$0xff]
  %v59 = vld [vmem:[%s3 + $0x98] sm:$0xff]
  %v60 = vld [vmem:[%s3 + $0xa0] sm:$0xff]
  %v61 = vld [vmem:[%s3 + $0xa8] sm:$0xff]
  %v62 = vld [vmem:[%s3 + $0xb0] sm:$0xff]
  %v63 = vld [vmem:[%s3 + $0xb8] sm:$0xff]
  %v64 = vld [vmem:[%s3 + $0xc0] sm:$0xff]
  %v65 = vld [vmem:[%s3 + $0xc8] sm:$0xff]
  %v66 = vld [vmem:[%s3 + $0xd0] sm:$0xff]
  %v67 = vld [vmem:[%s3 + $0xd8] sm:$0xff]
  %v68 = vld [vmem:[%s3 + $0xe0] sm:$0xff]
  %v69 = vld [vmem:[%s3 + $0xe8] sm:$0xff]
  %v70 = vld [vmem:[%s3 + $0xf0] sm:$0xff]
  %v71 = vld [vmem:[%s3 + $0xf8] sm:$0xff]
  %v72 = vld [vmem:[%s3 + $0x100] sm:$0xff]
  %v73 = vld [vmem:[%s3 + $0x108] sm:$0xff]
  %v74 = vld [vmem:[%s3 + $0x110] sm:$0xff]
  %v75 = vld [vmem:[%s3 + $0x118] sm:$0xff]
  %v76 = vld [vmem:[%s3 + $0x120] sm:$0xff]
  %v77 = vld [vmem:[%s3 + $0x128] sm:$0xff]
  %v78 = vld [vmem:[%s3 + $0x130] sm:$0xff]
  %v79 = vld [vmem:[%s3 + $0x138] sm:$0xff]
  %v80 = vld [vmem:[%s3 + $0x140] sm:$0xff]
  %v81 = vld [vmem:[%s3 + $0x148] sm:$0xff]
  %v82 = vld [vmem:[%s3 + $0x150] sm:$0xff]
  %v83 = vld [vmem:[%s3 + $0x158] sm:$0xff]
  %v84 = vld [vmem:[%s3 + $0x160] sm:$0xff]
  %v85 = vld [vmem:[%s3 + $0x168] sm:$0xff]
  %v86 = vld [vmem:[%s3 + $0x170] sm:$0xff]
  %v87 = vld [vmem:[%s3 + $0x178] sm:$0xff]
  %v88 = vld [vmem:[%s3 + $0x180] sm:$0xff]
  %v89 = vld [vmem:[%s3 + $0x188] sm:$0xff]
  %v90 = vld [vmem:[%s3 + $0x190] sm:$0xff]
  %v91 = vld [vmem:[%s3 + $0x198] sm:$0xff]
  %v92 = vld [vmem:[%s3 + $0x1a0] sm:$0xff]
  %v93 = vld [vmem:[%s3 + $0x1a8] sm:$0xff]
  %v94 = vld [vmem:[%s3 + $0x1b0] sm:$0xff]
  %v95 = vld [vmem:[%s3 + $0x1b8] sm:$0xff]
  %v96 = vld [vmem:[%s3 + $0x1c0] sm:$0xff]
  %v97 = vld [vmem:[%s3 + $0x1c8] sm:$0xff]
  %v98 = vld [vmem:[%s3 + $0x1d0] sm:$0xff]
  %v99 = vld [vmem:[%s3 + $0x1d8] sm:$0xff]
  %v100 = vld [vmem:[%s3 + $0x1e0] sm:$0xff]
  %v101 = vld [vmem:[%s3 + $0x1e8] sm:$0xff]
  %v102 = vld [vmem:[%s3 + $0x1f0] sm:$0xff]
  %v103 = vld [vmem:[%s3 + $0x1f8] sm:$0xff]
  %v104 = vld [vmem:[%s3 + $0x200] sm:$0xff]
  %v105 = vld [vmem:[%s3 + $0x208] sm:$0xff]
  %v106 = vld [vmem:[%s3 + $0x210] sm:$0xff]
  %v107 = vld [vmem:[%s3 + $0x218] sm:$0xff]
  %v108 = vld [vmem:[%s3 + $0x220] sm:$0xff]
  %v109 = vld [vmem:[%s3 + $0x228] sm:$0xff]
  %v110 = vld [vmem:[%s3 + $0x230] sm:$0xff]
  %v111 = vld [vmem:[%s3 + $0x238] sm:$0xff]
  %v112 = vld [vmem:[%s3 + $0x240] sm:$0xff]
  %v113 = vld [vmem:[%s3 + $0x248] sm:$0xff]
  %v114 = vld [vmem:[%s3 + $0x250] sm:$0xff]
  %v115 = vld [vmem:[%s3 + $0x258] sm:$0xff]
  %v116 = vld [vmem:[%s3 + $0x260] sm:$0xff]
  %v117 = vld [vmem:[%s3 + $0x268] sm:$0xff]
  %v118 = vld [vmem:[%s3 + $0x270] sm:$0xff]
  %v119 = vld [vmem:[%s3 + $0x278] sm:$0xff]
  %v120 = vld [vmem:[%s3 + $0x280] sm:$0xff]
  %v121 = vld [vmem:[%s3 + $0x288] sm:$0xff]
  %v122 = vld [vmem:[%s3 + $0x290] sm:$0xff]
  %v123 = vld [vmem:[%s3 + $0x298] sm:$0xff]
  %v124 = vld [vmem:[%s3 + $0x2a0] sm:$0xff]
  %v125 = vld [vmem:[%s3 + $0x2a8] sm:$0xff]
  %v126 = vld [vmem:[%s3 + $0x2b0] sm:$0xff]
  %v127 = vld [vmem:[%s3 + $0x2b8] sm:$0xff]
  %v128 = vld [vmem:[%s3 + $0x2c0] sm:$0xff]
  %v129 = vld [vmem:[%s3 + $0x2c8] sm:$0xff]
  %v130 = vld [vmem:[%s3 + $0x2d0] sm:$0xff]
  %v131 = vld [vmem:[%s3 + $0x2d8] sm:$0xff]
  %v132 = vld [vmem:[%s3 + $0x2e0] sm:$0xff]
  %v133 = vld [vmem:[%s3 + $0x2e8] sm:$0xff]
  %v134 = vld [vmem:[%s3 + $0x2f0] sm:$0xff]
  %v135 = vld [vmem:[%s3 + $0x2f8] sm:$0xff]
  %v136 = vld [vmem:[%s3 + $0x300] sm:$0xff]
  %v137 = vld [vmem:[%s3 + $0x308] sm:$0xff]
  %v138 = vld [vmem:[%s3 + $0x310] sm:$0xff]
  %v139 = vld [vmem:[%s3 + $0x318] sm:$0xff]
  %v140 = vld [vmem:[%s3 + $0x320] sm:$0xff]
  %v141 = vld [vmem:[%s3 + $0x328] sm:$0xff]
  %v142 = vld [vmem:[%s3 + $0x330] sm:$0xff]
  %v143 = vld [vmem:[%s3 + $0x338] sm:$0xff]
  %v144 = vld [vmem:[%s3 + $0x340] sm:$0xff]
  %v145 = vld [vmem:[%s3 + $0x348] sm:$0xff]
  %v146 = vld [vmem:[%s3 + $0x350] sm:$0xff]
  %v147 = vld [vmem:[%s3 + $0x358] sm:$0xff]
  %v148 = vld [vmem:[%s3 + $0x360] sm:$0xff]
  %v149 = vld [vmem:[%s3 + $0x368] sm:$0xff]
  %v150 = vld [vmem:[%s3 + $0x370] sm:$0xff]
  %v151 = vld [vmem:[%s3 + $0x378] sm:$0xff]
  %v152 = vld [vmem:[%s3 + $0x380] sm:$0xff]
  %v153 = vld [vmem:[%s3 + $0x388] sm:$0xff]
  %v154 = vld [vmem:[%s3 + $0x390] sm:$0xff]
  %v155 = vld [vmem:[%s3 + $0x398] sm:$0xff]
  %v156 = vld [vmem:[%s3 + $0x3a0] sm:$0xff]
  %v157 = vld [vmem:[%s3 + $0x3a8] sm:$0xff]
  %v158 = vld [vmem:[%s3 + $0x3b0] sm:$0xff]
  %v159 = vld [vmem:[%s3 + $0x3b8] sm:$0xff]
  %v160 = vld [vmem:[%s3 + $0x3c0] sm:$0xff]
  %v161 = vld [vmem:[%s3 + $0x3c8] sm:$0xff]
  %v162 = vld [vmem:[%s3 + $0x3d0] sm:$0xff]
  %v163 = vld [vmem:[%s3 + $0x3d8] sm:$0xff]
  %v164 = vld [vmem:[%s3 + $0x3e0] sm:$0xff]
  %v165 = vld [vmem:[%s3 + $0x3e8] sm:$0xff]
  %v166 = vld [vmem:[%s3 + $0x3f0] sm:$0xff]
  %v167 = vld [vmem:[%s3 + $0x3f8] sm:$0xff]
  %v168 = vld [vmem:[%s4] sm:$0x1]
  %v170 = vperm.slane %v168, 0
  %172 = vmatpush.msra.mxu0 %v55
  %173 = vmatpush.msra.mxu0 %v54
  %174 = vmatpush.msra.mxu0 %v53
  %175 = vmatpush.msra.mxu0 %v52
  %176 = vmatpush.msra.mxu0 %v51
  %177 = vmatpush.msra.mxu0 %v50
  %178 = vmatpush.msra.mxu0 %v49
  %179 = vmatpush.msra.mxu0 %v48
  %180 = vmatpush.msra.mxu0 %v47
  %181 = vmatpush.msra.mxu0 %v46
  %182 = vmatpush.msra.mxu0 %v45
  %183 = vmatpush.msra.mxu0 %v44
  %184 = vmatpush.msra.mxu0 %v43
  %185 = vmatpush.msra.mxu0 %v42
  %186 = vmatpush.msra.mxu0 %v41
  %187 = vmatpush.msra.mxu0 %v40
  %188 = vmatmul.f32.gmra.mxu0 %v32
  %v189 = vpop.f32.mrf.mxu0
  %v190 = vadd.f32 %v170, %v189
  %191 = vdwg.mxu0
  %192 = vmatpush.msra.mxu0 %v71
  %193 = vmatpush.msra.mxu0 %v70
  %194 = vmatpush.msra.mxu0 %v69
  %195 = vmatpush.msra.mxu0 %v68
  %196 = vmatpush.msra.mxu0 %v67
  %197 = vmatpush.msra.mxu0 %v66
  %198 = vmatpush.msra.mxu0 %v65
  %199 = vmatpush.msra.mxu0 %v64
  %200 = vmatpush.msra.mxu0 %v63
  %201 = vmatpush.msra.mxu0 %v62
  %202 = vmatpush.msra.mxu0 %v61
  %203 = vmatpush.msra.mxu0 %v60
  %204 = vmatpush.msra.mxu0 %v59
  %205 = vmatpush.msra.mxu0 %v58
  %206 = vmatpush.msra.mxu0 %v57
  %207 = vmatpush.msra.mxu0 %v56
  %208 = vmatmul.f32.gmra.mxu0 %v33
  %v209 = vpop.f32.mrf.mxu0
  %v210 = vadd.f32 %v190, %v209
  %211 = vdwg.mxu0
  %212 = vmatpush.msra.mxu0 %v87
  %213 = vmatpush.msra.mxu0 %v86
  %214 = vmatpush.msra.mxu0 %v85
  %215 = vmatpush.msra.mxu0 %v84
  %216 = vmatpush.msra.mxu0 %v83
  %217 = vmatpush.msra.mxu0 %v82
  %218 = vmatpush.msra.mxu0 %v81
  %219 = vmatpush.msra.mxu0 %v80
  %220 = vmatpush.msra.mxu0 %v79
  %221 = vmatpush.msra.mxu0 %v78
  %222 = vmatpush.msra.mxu0 %v77
  %223 = vmatpush.msra.mxu0 %v76
  %224 = vmatpush.msra.mxu0 %v75
  %225 = vmatpush.msra.mxu0 %v74
  %226 = vmatpush.msra.mxu0 %v73
  %227 = vmatpush.msra.mxu0 %v72
  %228 = vmatmul.f32.gmra.mxu0 %v34
  %v229 = vpop.f32.mrf.mxu0
  %v230 = vadd.f32 %v210, %v229
  %231 = vdwg.mxu0
  %232 = vmatpush.msra.mxu0 %v103
  %233 = vmatpush.msra.mxu0 %v102
  %234 = vmatpush.msra.mxu0 %v101
  %235 = vmatpush.msra.mxu0 %v100
  %236 = vmatpush.msra.mxu0 %v99
  %237 = vmatpush.msra.mxu0 %v98
  %238 = vmatpush.msra.mxu0 %v97
  %239 = vmatpush.msra.mxu0 %v96
  %240 = vmatpush.msra.mxu0 %v95
  %241 = vmatpush.msra.mxu0 %v94
  %242 = vmatpush.msra.mxu0 %v93
  %243 = vmatpush.msra.mxu0 %v92
  %244 = vmatpush.msra.mxu0 %v91
  %245 = vmatpush.msra.mxu0 %v90
  %246 = vmatpush.msra.mxu0 %v89
  %247 = vmatpush.msra.mxu0 %v88
  %248 = vmatmul.f32.gmra.mxu0 %v35
  %v249 = vpop.f32.mrf.mxu0
  %v250 = vadd.f32 %v230, %v249
  %251 = vdwg.mxu0
  %252 = vmatpush.msra.mxu0 %v119
  %253 = vmatpush.msra.mxu0 %v118
  %254 = vmatpush.msra.mxu0 %v117
  %255 = vmatpush.msra.mxu0 %v116
  %256 = vmatpush.msra.mxu0 %v115
  %257 = vmatpush.msra.mxu0 %v114
  %258 = vmatpush.msra.mxu0 %v113
  %259 = vmatpush.msra.mxu0 %v112
  %260 = vmatpush.msra.mxu0 %v111
  %261 = vmatpush.msra.mxu0 %v110
  %262 = vmatpush.msra.mxu0 %v109
  %263 = vmatpush.msra.mxu0 %v108
  %264 = vmatpush.msra.mxu0 %v107
  %265 = vmatpush.msra.mxu0 %v106
  %266 = vmatpush.msra.mxu0 %v105
  %267 = vmatpush.msra.mxu0 %v104
  %268 = vmatmul.f32.gmra.mxu0 %v36
  %v269 = vpop.f32.mrf.mxu0
  %v270 = vadd.f32 %v250, %v269
  %271 = vdwg.mxu0
  %272 = vmatpush.msra.mxu0 %v135
  %273 = vmatpush.msra.mxu0 %v134
  %274 = vmatpush.msra.mxu0 %v133
  %275 = vmatpush.msra.mxu0 %v132
  %276 = vmatpush.msra.mxu0 %v131
  %277 = vmatpush.msra.mxu0 %v130
  %278 = vmatpush.msra.mxu0 %v129
  %279 = vmatpush.msra.mxu0 %v128
  %280 = vmatpush.msra.mxu0 %v127
  %281 = vmatpush.msra.mxu0 %v126
  %282 = vmatpush.msra.mxu0 %v125
  %283 = vmatpush.msra.mxu0 %v124
  %284 = vmatpush.msra.mxu0 %v123
  %285 = vmatpush.msra.mxu0 %v122
  %286 = vmatpush.msra.mxu0 %v121
  %287 = vmatpush.msra.mxu0 %v120
  %288 = vmatmul.f32.gmra.mxu0 %v37
  %v289 = vpop.f32.mrf.mxu0
  %v290 = vadd.f32 %v270, %v289
  %291 = vdwg.mxu0
  %292 = vmatpush.msra.mxu0 %v151
  %293 = vmatpush.msra.mxu0 %v150
  %294 = vmatpush.msra.mxu0 %v149
  %295 = vmatpush.msra.mxu0 %v148
  %296 = vmatpush.msra.mxu0 %v147
  %297 = vmatpush.msra.mxu0 %v146
  %298 = vmatpush.msra.mxu0 %v145
  %299 = vmatpush.msra.mxu0 %v144
  %300 = vmatpush.msra.mxu0 %v143
  %301 = vmatpush.msra.mxu0 %v142
  %302 = vmatpush.msra.mxu0 %v141
  %303 = vmatpush.msra.mxu0 %v140
  %304 = vmatpush.msra.mxu0 %v139
  %305 = vmatpush.msra.mxu0 %v138
  %306 = vmatpush.msra.mxu0 %v137
  %307 = vmatpush.msra.mxu0 %v136
  %308 = vmatmul.f32.gmra.mxu0 %v38
  %v309 = vpop.f32.mrf.mxu0
  %v310 = vadd.f32 %v290, %v309
  %311 = vdwg.mxu0
  %312 = vmatpush.msra.mxu0 %v167
  %313 = vmatpush.msra.mxu0 %v166
  %314 = vmatpush.msra.mxu0 %v165
  %315 = vmatpush.msra.mxu0 %v164
  %316 = vmatpush.msra.mxu0 %v163
  %317 = vmatpush.msra.mxu0 %v162
  %318 = vmatpush.msra.mxu0 %v161
  %319 = vmatpush.msra.mxu0 %v160
  %320 = vmatpush.msra.mxu0 %v159
  %321 = vmatpush.msra.mxu0 %v158
  %322 = vmatpush.msra.mxu0 %v157
  %323 = vmatpush.msra.mxu0 %v156
  %324 = vmatpush.msra.mxu0 %v155
  %325 = vmatpush.msra.mxu0 %v154
  %326 = vmatpush.msra.mxu0 %v153
  %327 = vmatpush.msra.mxu0 %v152
  %328 = vmatmul.f32.gmra.mxu0 %v39
  %v329 = vpop.f32.mrf.mxu0
  %v330 = vadd.f32 %v310, %v329
  %331 = vdwg.mxu0
  %v332 = vld [vmem:[%s1] sm:$0xff]
  %v333 = vld [vmem:[%s1 + $0x8] sm:$0xff]
  %v334 = vld [vmem:[%s5] sm:$0xff]
  %v335 = vld [vmem:[%s5 + $0x8] sm:$0xff]
  %v336 = vld [vmem:[%s5 + $0x10] sm:$0xff]
  %v337 = vld [vmem:[%s5 + $0x18] sm:$0xff]
  %v338 = vld [vmem:[%s7] sm:$0x1]
  %v340 = vperm.slane %v338, 0
  %vm342 = vcmask 261120
  %v344 = vsel %vm342, %v332, 0
  %v347 = vsel %vm342, %v333, 0
  %349 = vmatpush.msra.mxu0 0.0
  %350 = vmatpush.msra.mxu0 0.0
  %351 = vmatpush.msra.mxu0 0.0
  %352 = vmatpush.msra.mxu0 0.0
  %353 = vmatpush.msra.mxu0 0.0
  %354 = vmatpush.msra.mxu0 0.0
  %355 = vmatpush.msra.mxu0 0.0
  %356 = vmatpush.msra.mxu0 0.0
  %357 = vmatpush.msra.mxu0 0.0
  %358 = vmatpush.msra.mxu0 0.0
  %359 = vmatpush.msra.mxu0 0.0
  %360 = vmatpush.msra.mxu0 0.0
  %361 = vmatpush.msra.mxu0 %v337
  %362 = vmatpush.msra.mxu0 %v336
  %363 = vmatpush.msra.mxu0 %v335
  %364 = vmatpush.msra.mxu0 %v334
  %365 = vmatmul.f32.gmra.mxu0 %v344
  %v366 = vpop.f32.mrf.mxu0
  %v367 = vadd.f32 %v340, %v366
  %368 = vmatmul.f32.gmra.mxu0 %v347
  %v369 = vpop.f32.mrf.mxu0
  %v370 = vadd.f32 %v340, %v369
  %371 = vdwg.mxu0
  %v374 = vrot.slane %v367, 2
  %v375 = vrot.slane %v367, 4
  %v376 = vrot.slane %v367, 6
  %v377 = vrot.slane %v370, 2
  %v378 = vrot.slane %v370, 4
  %v379 = vrot.slane %v370, 6
  %s386 = scalar_lea.vmem [#allocation1], 1
  %387 = vst [vmem:[%s386] ss:$4 sm:$0xff] %v367
  %v388 = vld.sshfl [vmem:[#allocation1] sm:$0xff pattern:$0x73625140]
  %s389 = scalar_lea.vmem [#allocation1], 33
  %390 = vst [vmem:[%s389] ss:$4 sm:$0xff] %v374
  %v391 = vld.sshfl [vmem:[#allocation1 + $0x20] sm:$0xff pattern:$0x73625140]
  %392 = vst [vmem:[%s386] ss:$4 sm:$0xff] %v375
  %v393 = vld.sshfl [vmem:[#allocation1] sm:$0xff pattern:$0x73625140]
  %394 = vst [vmem:[%s389] ss:$4 sm:$0xff] %v376
  %v395 = vld.sshfl [vmem:[#allocation1 + $0x20] sm:$0xff pattern:$0x73625140]
  %396 = vst [vmem:[%s386] ss:$4 sm:$0xff] %v370
  %v397 = vld.sshfl [vmem:[#allocation1] sm:$0xff pattern:$0x73625140]
  %398 = vst [vmem:[%s389] ss:$4 sm:$0xff] %v377
  %v399 = vld.sshfl [vmem:[#allocation1 + $0x20] sm:$0xff pattern:$0x73625140]
  %400 = vst [vmem:[%s386] ss:$4 sm:$0xff] %v378
  %v401 = vld.sshfl [vmem:[#allocation1] sm:$0xff pattern:$0x73625140]
  %402 = vst [vmem:[%s389] ss:$4 sm:$0xff] %v379
  %v403 = vld.sshfl [vmem:[#allocation1 + $0x20] sm:$0xff pattern:$0x73625140]
  %s412 = scalar_lea.vmem [#allocation1], 2
  %413 = vst [vmem:[%s412] ss:$4 sm:$0xff] %v367
  %v414 = vld.sshfl [vmem:[#allocation1] sm:$0xff pattern:$0x73625140]
  %s415 = scalar_lea.vmem [#allocation1], 34
  %416 = vst [vmem:[%s415] ss:$4 sm:$0xff] %v374
  %v417 = vld.sshfl [vmem:[#allocation1 + $0x20] sm:$0xff pattern:$0x73625140]
  %418 = vst [vmem:[%s412] ss:$4 sm:$0xff] %v375
  %v419 = vld.sshfl [vmem:[#allocation1] sm:$0xff pattern:$0x73625140]
  %420 = vst [vmem:[%s415] ss:$4 sm:$0xff] %v376
  %v421 = vld.sshfl [vmem:[#allocation1 + $0x20] sm:$0xff pattern:$0x73625140]
  %422 = vst [vmem:[%s412] ss:$4 sm:$0xff] %v370
  %v423 = vld.sshfl [vmem:[#allocation1] sm:$0xff pattern:$0x73625140]
  %424 = vst [vmem:[%s415] ss:$4 sm:$0xff] %v377
  %v425 = vld.sshfl [vmem:[#allocation1 + $0x20] sm:$0xff pattern:$0x73625140]
  %426 = vst [vmem:[%s412] ss:$4 sm:$0xff] %v378
  %v427 = vld.sshfl [vmem:[#allocation1] sm:$0xff pattern:$0x73625140]
  %428 = vst [vmem:[%s415] ss:$4 sm:$0xff] %v379
  %v429 = vld.sshfl [vmem:[#allocation1 + $0x20] sm:$0xff pattern:$0x73625140]
  %s438 = scalar_lea.vmem [#allocation1], 3
  %439 = vst [vmem:[%s438] ss:$4 sm:$0xff] %v367
  %v440 = vld.sshfl [vmem:[#allocation1] sm:$0xff pattern:$0x73625140]
  %s441 = scalar_lea.vmem [#allocation1], 35
  %442 = vst [vmem:[%s441] ss:$4 sm:$0xff] %v374
  %v443 = vld.sshfl [vmem:[#allocation1 + $0x20] sm:$0xff pattern:$0x73625140]
  %444 = vst [vmem:[%s438] ss:$4 sm:$0xff] %v375
  %v445 = vld.sshfl [vmem:[#allocation1] sm:$0xff pattern:$0x73625140]
  %446 = vst [vmem:[%s441] ss:$4 sm:$0xff] %v376
  %v447 = vld.sshfl [vmem:[#allocation1 + $0x20] sm:$0xff pattern:$0x73625140]
  %448 = vst [vmem:[%s438] ss:$4 sm:$0xff] %v370
  %v449 = vld.sshfl [vmem:[#allocation1] sm:$0xff pattern:$0x73625140]
  %450 = vst [vmem:[%s441] ss:$4 sm:$0xff] %v377
  %v451 = vld.sshfl [vmem:[#allocation1 + $0x20] sm:$0xff pattern:$0x73625140]
  %452 = vst [vmem:[%s438] ss:$4 sm:$0xff] %v378
  %v453 = vld.sshfl [vmem:[#allocation1] sm:$0xff pattern:$0x73625140]
  %454 = vst [vmem:[%s441] ss:$4 sm:$0xff] %v379
  %v455 = vld.sshfl [vmem:[#allocation1 + $0x20] sm:$0xff pattern:$0x73625140]
  %vm464 = vcmask 1041408
  %v465 = vsel %vm464, %v367, %v388
  %v466 = vsel %vm464, %v374, %v391
  %v467 = vsel %vm464, %v375, %v393
  %v468 = vsel %vm464, %v376, %v395
  %v469 = vsel %vm464, %v370, %v397
  %v470 = vsel %vm464, %v377, %v399
  %v471 = vsel %vm464, %v378, %v401
  %v472 = vsel %vm464, %v379, %v403
  %vm473 = vcmask 1043456
  %v474 = vsel %vm473, %v465, %v414
  %v475 = vsel %vm473, %v466, %v417
  %v476 = vsel %vm473, %v467, %v419
  %v477 = vsel %vm473, %v468, %v421
  %v478 = vsel %vm473, %v469, %v423
  %v479 = vsel %vm473, %v470, %v425
  %v480 = vsel %vm473, %v471, %v427
  %v481 = vsel %vm473, %v472, %v429
  %vm482 = vcmask 1045504
  %v483 = vsel %vm482, %v474, %v440
  %v484 = vsel %vm482, %v475, %v443
  %v485 = vsel %vm482, %v476, %v445
  %v486 = vsel %vm482, %v477, %v447
  %v487 = vsel %vm482, %v478, %v449
  %v488 = vsel %vm482, %v479, %v451
  %v489 = vsel %vm482, %v480, %v453
  %v490 = vsel %vm482, %v481, %v455
  %v491 = vld [vmem:[%s2] sm:$0xff]
  %v492 = vld [vmem:[%s2 + $0x8] sm:$0xff]
  %v493 = vld [vmem:[%s2 + $0x10] sm:$0xff]
  %v494 = vld [vmem:[%s2 + $0x18] sm:$0xff]
  %v495 = vld [vmem:[%s2 + $0x20] sm:$0xff]
  %v496 = vld [vmem:[%s2 + $0x28] sm:$0xff]
  %v497 = vld [vmem:[%s2 + $0x30] sm:$0xff]
  %v498 = vld [vmem:[%s2 + $0x38] sm:$0xff]
  %v499 = vld [vmem:[%s6] sm:$0xff]
  %v500 = vld [vmem:[%s6 + $0x8] sm:$0xff]
  %v501 = vld [vmem:[%s6 + $0x10] sm:$0xff]
  %v502 = vld [vmem:[%s6 + $0x18] sm:$0xff]
  %v503 = vld [vmem:[%s8] sm:$0x1]
  %v505 = vperm.slane %v503, 0
  %v507 = vsel %vm342, %v330, 0
  %509 = vmatpush.msra.mxu0 0.0
  %510 = vmatpush.msra.mxu0 0.0
  %511 = vmatpush.msra.mxu0 0.0
  %512 = vmatpush.msra.mxu0 0.0
  %513 = vmatpush.msra.mxu0 0.0
  %514 = vmatpush.msra.mxu0 0.0
  %515 = vmatpush.msra.mxu0 0.0
  %516 = vmatpush.msra.mxu0 0.0
  %517 = vmatpush.msra.mxu0 0.0
  %518 = vmatpush.msra.mxu0 0.0
  %519 = vmatpush.msra.mxu0 0.0
  %520 = vmatpush.msra.mxu0 0.0
  %521 = vmatpush.msra.mxu0 %v502
  %522 = vmatpush.msra.mxu0 %v501
  %523 = vmatpush.msra.mxu0 %v500
  %524 = vmatpush.msra.mxu0 %v499
  %525 = vmatmul.f32.gmra.mxu0 %v507
  %v526 = vpop.f32.mrf.mxu0
  %v527 = vadd.f32 0.0, %v526
  %528 = vdwg.mxu0
  %v529 = vadd.f32 %v483, %v527
  %v530 = vxor.u32 %v529, 2147483648
  %v531 = vmul.f32 %v530, 1.442695
  %v532 = vpow.pop %v531
  %v533 = vadd.f32 %v532, 1.0
  %v534 = vrcp.pop %v533
  %v535 = vmul.f32 %v533, %v534
  %v536 = vsub.f32 1.0, %v535
  %v537 = vmul.f32 %v534, %v536
  %v538 = vadd.f32 %v534, %v537
  %vm539 = vweird.f32 %v533
  %vm540 = vweird.f32 %v534
  %vm541 = vmor %vm539, %vm540
  %v542 = vsel %vm541, %v534, %v538
  %v543 = vand.u32 2147483647, %v533
  %vm544 = vcmp.eq.f32.partialorder %v543, 8.507059e+37
  %v545 = vand.u32 %v533, 2147483648
  %v546 = vor.u32 1.1754944e-38, %v545
  %v547 = vsel %vm544, %v546, %v542
  %v548 = vmul.f32 1.0, %v547
  %549 = vrot.lane.b32.xlu0 %v505, 64
  %v550 = vpop.permute.xlu0 %549
  %v552 = vadd.f32 %v527, %v550
  %554 = vrot.lane.b32.xlu0 %v552, 64
  %v555 = vpop.permute.xlu0 %554
  %v557 = vmul.f32 %v548, %v555
  %559 = vrot.lane.b32.xlu0 %v557, 64
  %v560 = vpop.permute.xlu0 %559
  %v562 = vadd.f32 %v483, %v560
  %v563 = vtanh.pop %v562
  %v564 = vsub.f32 1.0, %v548
  %566 = vrot.lane.b32.xlu0 %v563, 96
  %v567 = vpop.permute.xlu0 %566
  %v569 = vmul.f32 %v564, %v567
  %570 = vrot.lane.b32.xlu0 %v330, 32
  %v571 = vpop.permute.xlu0 %570
  %v573 = vmul.f32 %v548, %v571
  %v574 = vadd.f32 %v569, %v573
  %vm575 = vcmp.gt.f32.partialorder %v491, 0.0
  %v576 = vsel %vm575, 1, 0
  %577 = vset.pattern.permute.xlu0 0
  %578 = vperm.xlu0 %577, %v576
  %v579 = vpop.permute.xlu0 %578
  %vm580 = vcmp.eq.s32.totalorder %v579, 1
  %v581 = vsel %vm580, %v574, %v571
  %583 = vrot.lane.b32.xlu0 %v581, 96
  %v584 = vpop.permute.xlu0 %583
  %v585 = vsel %vm342, %v584, 0
  %587 = vmatpush.msra.mxu0 0.0
  %588 = vmatpush.msra.mxu0 0.0
  %589 = vmatpush.msra.mxu0 0.0
  %590 = vmatpush.msra.mxu0 0.0
  %591 = vmatpush.msra.mxu0 0.0
  %592 = vmatpush.msra.mxu0 0.0
  %593 = vmatpush.msra.mxu0 0.0
  %594 = vmatpush.msra.mxu0 0.0
  %595 = vmatpush.msra.mxu0 0.0
  %596 = vmatpush.msra.mxu0 0.0
  %597 = vmatpush.msra.mxu0 0.0
  %598 = vmatpush.msra.mxu0 0.0
  %599 = vmatpush.msra.mxu0 %v502
  %600 = vmatpush.msra.mxu0 %v501
  %601 = vmatpush.msra.mxu0 %v500
  %602 = vmatpush.msra.mxu0 %v499
  %603 = vmatmul.f32.gmra.mxu0 %v585
  %v604 = vpop.f32.mrf.mxu0
  %v605 = vadd.f32 0.0, %v604
  %606 = vdwg.mxu0
  %v607 = vadd.f32 %v484, %v605
  %v608 = vxor.u32 %v607, 2147483648
  %v609 = vmul.f32 %v608, 1.442695
  %v610 = vpow.pop %v609
  %v611 = vadd.f32 %v610, 1.0
  %v612 = vrcp.pop %v611
  %v613 = vmul.f32 %v611, %v612
  %v614 = vsub.f32 1.0, %v613
  %v615 = vmul.f32 %v612, %v614
  %v616 = vadd.f32 %v612, %v615
  %vm617 = vweird.f32 %v611
  %vm618 = vweird.f32 %v612
  %vm619 = vmor %vm617, %vm618
  %v620 = vsel %vm619, %v612, %v616
  %v621 = vand.u32 2147483647, %v611
  %vm622 = vcmp.eq.f32.partialorder %v621, 8.507059e+37
  %v623 = vand.u32 %v611, 2147483648
  %v624 = vor.u32 1.1754944e-38, %v623
  %v625 = vsel %vm622, %v624, %v620
  %v626 = vmul.f32 1.0, %v625
  %v627 = vadd.f32 %v605, %v550
  %629 = vrot.lane.b32.xlu0 %v627, 64
  %v630 = vpop.permute.xlu0 %629
  %v632 = vmul.f32 %v626, %v630
  %634 = vrot.lane.b32.xlu0 %v632, 64
  %v635 = vpop.permute.xlu0 %634
  %v637 = vadd.f32 %v484, %v635
  %v638 = vtanh.pop %v637
  %v639 = vsub.f32 1.0, %v626
  %641 = vrot.lane.b32.xlu0 %v638, 96
  %v642 = vpop.permute.xlu0 %641
  %v644 = vmul.f32 %v639, %v642
  %v645 = vmul.f32 %v626, %v581
  %v646 = vadd.f32 %v644, %v645
  %vm647 = vcmp.gt.f32.partialorder %v492, 0.0
  %v648 = vsel %vm647, 1, 0
  %649 = vset.pattern.permute.xlu0 0
  %650 = vperm.xlu0 %649, %v648
  %v651 = vpop.permute.xlu0 %650
  %vm652 = vcmp.eq.s32.totalorder %v651, 1
  %v653 = vsel %vm652, %v646, %v581
  %655 = vrot.lane.b32.xlu0 %v653, 96
  %v656 = vpop.permute.xlu0 %655
  %v657 = vsel %vm342, %v656, 0
  %659 = vmatpush.msra.mxu0 0.0
  %660 = vmatpush.msra.mxu0 0.0
  %661 = vmatpush.msra.mxu0 0.0
  %662 = vmatpush.msra.mxu0 0.0
  %663 = vmatpush.msra.mxu0 0.0
  %664 = vmatpush.msra.mxu0 0.0
  %665 = vmatpush.msra.mxu0 0.0
  %666 = vmatpush.msra.mxu0 0.0
  %667 = vmatpush.msra.mxu0 0.0
  %668 = vmatpush.msra.mxu0 0.0
  %669 = vmatpush.msra.mxu0 0.0
  %670 = vmatpush.msra.mxu0 0.0
  %671 = vmatpush.msra.mxu0 %v502
  %672 = vmatpush.msra.mxu0 %v501
  %673 = vmatpush.msra.mxu0 %v500
  %674 = vmatpush.msra.mxu0 %v499
  %675 = vmatmul.f32.gmra.mxu0 %v657
  %v676 = vpop.f32.mrf.mxu0
  %v677 = vadd.f32 0.0, %v676
  %678 = vdwg.mxu0
  %v679 = vadd.f32 %v485, %v677
  %v680 = vxor.u32 %v679, 2147483648
  %v681 = vmul.f32 %v680, 1.442695
  %v682 = vpow.pop %v681
  %v683 = vadd.f32 %v682, 1.0
  %v684 = vrcp.pop %v683
  %v685 = vmul.f32 %v683, %v684
  %v686 = vsub.f32 1.0, %v685
  %v687 = vmul.f32 %v684, %v686
  %v688 = vadd.f32 %v684, %v687
  %vm689 = vweird.f32 %v683
  %vm690 = vweird.f32 %v684
  %vm691 = vmor %vm689, %vm690
  %v692 = vsel %vm691, %v684, %v688
  %v693 = vand.u32 2147483647, %v683
  %vm694 = vcmp.eq.f32.partialorder %v693, 8.507059e+37
  %v695 = vand.u32 %v683, 2147483648
  %v696 = vor.u32 1.1754944e-38, %v695
  %v697 = vsel %vm694, %v696, %v692
  %v698 = vmul.f32 1.0, %v697
  %v699 = vadd.f32 %v677, %v550
  %701 = vrot.lane.b32.xlu0 %v699, 64
  %v702 = vpop.permute.xlu0 %701
  %v704 = vmul.f32 %v698, %v702
  %706 = vrot.lane.b32.xlu0 %v704, 64
  %v707 = vpop.permute.xlu0 %706
  %v709 = vadd.f32 %v485, %v707
  %v710 = vtanh.pop %v709
  %v711 = vsub.f32 1.0, %v698
  %713 = vrot.lane.b32.xlu0 %v710, 96
  %v714 = vpop.permute.xlu0 %713
  %v716 = vmul.f32 %v711, %v714
  %v717 = vmul.f32 %v698, %v653
  %v718 = vadd.f32 %v716, %v717
  %vm719 = vcmp.gt.f32.partialorder %v493, 0.0
  %v720 = vsel %vm719, 1, 0
  %721 = vset.pattern.permute.xlu0 0
  %722 = vperm.xlu0 %721, %v720
  %v723 = vpop.permute.xlu0 %722
  %vm724 = vcmp.eq.s32.totalorder %v723, 1
  %v725 = vsel %vm724, %v718, %v653
  %727 = vrot.lane.b32.xlu0 %v725, 96
  %v728 = vpop.permute.xlu0 %727
  %v729 = vsel %vm342, %v728, 0
  %731 = vmatpush.msra.mxu0 0.0
  %732 = vmatpush.msra.mxu0 0.0
  %733 = vmatpush.msra.mxu0 0.0
  %734 = vmatpush.msra.mxu0 0.0
  %735 = vmatpush.msra.mxu0 0.0
  %736 = vmatpush.msra.mxu0 0.0
  %737 = vmatpush.msra.mxu0 0.0
  %738 = vmatpush.msra.mxu0 0.0
  %739 = vmatpush.msra.mxu0 0.0
  %740 = vmatpush.msra.mxu0 0.0
  %741 = vmatpush.msra.mxu0 0.0
  %742 = vmatpush.msra.mxu0 0.0
  %743 = vmatpush.msra.mxu0 %v502
  %744 = vmatpush.msra.mxu0 %v501
  %745 = vmatpush.msra.mxu0 %v500
  %746 = vmatpush.msra.mxu0 %v499
  %747 = vmatmul.f32.gmra.mxu0 %v729
  %v748 = vpop.f32.mrf.mxu0
  %v749 = vadd.f32 0.0, %v748
  %750 = vdwg.mxu0
  %v751 = vadd.f32 %v486, %v749
  %v752 = vxor.u32 %v751, 2147483648
  %v753 = vmul.f32 %v752, 1.442695
  %v754 = vpow.pop %v753
  %v755 = vadd.f32 %v754, 1.0
  %v756 = vrcp.pop %v755
  %v757 = vmul.f32 %v755, %v756
  %v758 = vsub.f32 1.0, %v757
  %v759 = vmul.f32 %v756, %v758
  %v760 = vadd.f32 %v756, %v759
  %vm761 = vweird.f32 %v755
  %vm762 = vweird.f32 %v756
  %vm763 = vmor %vm761, %vm762
  %v764 = vsel %vm763, %v756, %v760
  %v765 = vand.u32 2147483647, %v755
  %vm766 = vcmp.eq.f32.partialorder %v765, 8.507059e+37
  %v767 = vand.u32 %v755, 2147483648
  %v768 = vor.u32 1.1754944e-38, %v767
  %v769 = vsel %vm766, %v768, %v764
  %v770 = vmul.f32 1.0, %v769
  %v771 = vadd.f32 %v749, %v550
  %773 = vrot.lane.b32.xlu0 %v771, 64
  %v774 = vpop.permute.xlu0 %773
  %v776 = vmul.f32 %v770, %v774
  %778 = vrot.lane.b32.xlu0 %v776, 64
  %v779 = vpop.permute.xlu0 %778
  %v781 = vadd.f32 %v486, %v779
  %v782 = vtanh.pop %v781
  %v783 = vsub.f32 1.0, %v770
  %785 = vrot.lane.b32.xlu0 %v782, 96
  %v786 = vpop.permute.xlu0 %785
  %v788 = vmul.f32 %v783, %v786
  %v789 = vmul.f32 %v770, %v725
  %v790 = vadd.f32 %v788, %v789
  %vm791 = vcmp.gt.f32.partialorder %v494, 0.0
  %v792 = vsel %vm791, 1, 0
  %793 = vset.pattern.permute.xlu0 0
  %794 = vperm.xlu0 %793, %v792
  %v795 = vpop.permute.xlu0 %794
  %vm796 = vcmp.eq.s32.totalorder %v795, 1
  %v797 = vsel %vm796, %v790, %v725
  %799 = vrot.lane.b32.xlu0 %v797, 96
  %v800 = vpop.permute.xlu0 %799
  %v801 = vsel %vm342, %v800, 0
  %803 = vmatpush.msra.mxu0 0.0
  %804 = vmatpush.msra.mxu0 0.0
  %805 = vmatpush.msra.mxu0 0.0
  %806 = vmatpush.msra.mxu0 0.0
  %807 = vmatpush.msra.mxu0 0.0
  %808 = vmatpush.msra.mxu0 0.0
  %809 = vmatpush.msra.mxu0 0.0
  %810 = vmatpush.msra.mxu0 0.0
  %811 = vmatpush.msra.mxu0 0.0
  %812 = vmatpush.msra.mxu0 0.0
  %813 = vmatpush.msra.mxu0 0.0
  %814 = vmatpush.msra.mxu0 0.0
  %815 = vmatpush.msra.mxu0 %v502
  %816 = vmatpush.msra.mxu0 %v501
  %817 = vmatpush.msra.mxu0 %v500
  %818 = vmatpush.msra.mxu0 %v499
  %819 = vmatmul.f32.gmra.mxu0 %v801
  %v820 = vpop.f32.mrf.mxu0
  %v821 = vadd.f32 0.0, %v820
  %822 = vdwg.mxu0
  %v823 = vadd.f32 %v487, %v821
  %v824 = vxor.u32 %v823, 2147483648
  %v825 = vmul.f32 %v824, 1.442695
  %v826 = vpow.pop %v825
  %v827 = vadd.f32 %v826, 1.0
  %v828 = vrcp.pop %v827
  %v829 = vmul.f32 %v827, %v828
  %v830 = vsub.f32 1.0, %v829
  %v831 = vmul.f32 %v828, %v830
  %v832 = vadd.f32 %v828, %v831
  %vm833 = vweird.f32 %v827
  %vm834 = vweird.f32 %v828
  %vm835 = vmor %vm833, %vm834
  %v836 = vsel %vm835, %v828, %v832
  %v837 = vand.u32 2147483647, %v827
  %vm838 = vcmp.eq.f32.partialorder %v837, 8.507059e+37
  %v839 = vand.u32 %v827, 2147483648
  %v840 = vor.u32 1.1754944e-38, %v839
  %v841 = vsel %vm838, %v840, %v836
  %v842 = vmul.f32 1.0, %v841
  %v843 = vadd.f32 %v821, %v550
  %845 = vrot.lane.b32.xlu0 %v843, 64
  %v846 = vpop.permute.xlu0 %845
  %v848 = vmul.f32 %v842, %v846
  %850 = vrot.lane.b32.xlu0 %v848, 64
  %v851 = vpop.permute.xlu0 %850
  %v853 = vadd.f32 %v487, %v851
  %v854 = vtanh.pop %v853
  %v855 = vsub.f32 1.0, %v842
  %857 = vrot.lane.b32.xlu0 %v854, 96
  %v858 = vpop.permute.xlu0 %857
  %v860 = vmul.f32 %v855, %v858
  %v861 = vmul.f32 %v842, %v797
  %v862 = vadd.f32 %v860, %v861
  %vm863 = vcmp.gt.f32.partialorder %v495, 0.0
  %v864 = vsel %vm863, 1, 0
  %865 = vset.pattern.permute.xlu0 0
  %866 = vperm.xlu0 %865, %v864
  %v867 = vpop.permute.xlu0 %866
  %vm868 = vcmp.eq.s32.totalorder %v867, 1
  %v869 = vsel %vm868, %v862, %v797
  %871 = vrot.lane.b32.xlu0 %v869, 96
  %v872 = vpop.permute.xlu0 %871
  %v873 = vsel %vm342, %v872, 0
  %875 = vmatpush.msra.mxu0 0.0
  %876 = vmatpush.msra.mxu0 0.0
  %877 = vmatpush.msra.mxu0 0.0
  %878 = vmatpush.msra.mxu0 0.0
  %879 = vmatpush.msra.mxu0 0.0
  %880 = vmatpush.msra.mxu0 0.0
  %881 = vmatpush.msra.mxu0 0.0
  %882 = vmatpush.msra.mxu0 0.0
  %883 = vmatpush.msra.mxu0 0.0
  %884 = vmatpush.msra.mxu0 0.0
  %885 = vmatpush.msra.mxu0 0.0
  %886 = vmatpush.msra.mxu0 0.0
  %887 = vmatpush.msra.mxu0 %v502
  %888 = vmatpush.msra.mxu0 %v501
  %889 = vmatpush.msra.mxu0 %v500
  %890 = vmatpush.msra.mxu0 %v499
  %891 = vmatmul.f32.gmra.mxu0 %v873
  %v892 = vpop.f32.mrf.mxu0
  %v893 = vadd.f32 0.0, %v892
  %894 = vdwg.mxu0
  %v895 = vadd.f32 %v488, %v893
  %v896 = vxor.u32 %v895, 2147483648
  %v897 = vmul.f32 %v896, 1.442695
  %v898 = vpow.pop %v897
  %v899 = vadd.f32 %v898, 1.0
  %v900 = vrcp.pop %v899
  %v901 = vmul.f32 %v899, %v900
  %v902 = vsub.f32 1.0, %v901
  %v903 = vmul.f32 %v900, %v902
  %v904 = vadd.f32 %v900, %v903
  %vm905 = vweird.f32 %v899
  %vm906 = vweird.f32 %v900
  %vm907 = vmor %vm905, %vm906
  %v908 = vsel %vm907, %v900, %v904
  %v909 = vand.u32 2147483647, %v899
  %vm910 = vcmp.eq.f32.partialorder %v909, 8.507059e+37
  %v911 = vand.u32 %v899, 2147483648
  %v912 = vor.u32 1.1754944e-38, %v911
  %v913 = vsel %vm910, %v912, %v908
  %v914 = vmul.f32 1.0, %v913
  %v915 = vadd.f32 %v893, %v550
  %917 = vrot.lane.b32.xlu0 %v915, 64
  %v918 = vpop.permute.xlu0 %917
  %v920 = vmul.f32 %v914, %v918
  %922 = vrot.lane.b32.xlu0 %v920, 64
  %v923 = vpop.permute.xlu0 %922
  %v925 = vadd.f32 %v488, %v923
  %v926 = vtanh.pop %v925
  %v927 = vsub.f32 1.0, %v914
  %929 = vrot.lane.b32.xlu0 %v926, 96
  %v930 = vpop.permute.xlu0 %929
  %v932 = vmul.f32 %v927, %v930
  %v933 = vmul.f32 %v914, %v869
  %v934 = vadd.f32 %v932, %v933
  %vm935 = vcmp.gt.f32.partialorder %v496, 0.0
  %v936 = vsel %vm935, 1, 0
  %937 = vset.pattern.permute.xlu0 0
  %938 = vperm.xlu0 %937, %v936
  %v939 = vpop.permute.xlu0 %938
  %vm940 = vcmp.eq.s32.totalorder %v939, 1
  %v941 = vsel %vm940, %v934, %v869
  %943 = vrot.lane.b32.xlu0 %v941, 96
  %v944 = vpop.permute.xlu0 %943
  %v945 = vsel %vm342, %v944, 0
  %947 = vmatpush.msra.mxu0 0.0
  %948 = vmatpush.msra.mxu0 0.0
  %949 = vmatpush.msra.mxu0 0.0
  %950 = vmatpush.msra.mxu0 0.0
  %951 = vmatpush.msra.mxu0 0.0
  %952 = vmatpush.msra.mxu0 0.0
  %953 = vmatpush.msra.mxu0 0.0
  %954 = vmatpush.msra.mxu0 0.0
  %955 = vmatpush.msra.mxu0 0.0
  %956 = vmatpush.msra.mxu0 0.0
  %957 = vmatpush.msra.mxu0 0.0
  %958 = vmatpush.msra.mxu0 0.0
  %959 = vmatpush.msra.mxu0 %v502
  %960 = vmatpush.msra.mxu0 %v501
  %961 = vmatpush.msra.mxu0 %v500
  %962 = vmatpush.msra.mxu0 %v499
  %963 = vmatmul.f32.gmra.mxu0 %v945
  %v964 = vpop.f32.mrf.mxu0
  %v965 = vadd.f32 0.0, %v964
  %966 = vdwg.mxu0
  %v967 = vadd.f32 %v489, %v965
  %v968 = vxor.u32 %v967, 2147483648
  %v969 = vmul.f32 %v968, 1.442695
  %v970 = vpow.pop %v969
  %v971 = vadd.f32 %v970, 1.0
  %v972 = vrcp.pop %v971
  %v973 = vmul.f32 %v971, %v972
  %v974 = vsub.f32 1.0, %v973
  %v975 = vmul.f32 %v972, %v974
  %v976 = vadd.f32 %v972, %v975
  %vm977 = vweird.f32 %v971
  %vm978 = vweird.f32 %v972
  %vm979 = vmor %vm977, %vm978
  %v980 = vsel %vm979, %v972, %v976
  %v981 = vand.u32 2147483647, %v971
  %vm982 = vcmp.eq.f32.partialorder %v981, 8.507059e+37
  %v983 = vand.u32 %v971, 2147483648
  %v984 = vor.u32 1.1754944e-38, %v983
  %v985 = vsel %vm982, %v984, %v980
  %v986 = vmul.f32 1.0, %v985
  %v987 = vadd.f32 %v965, %v550
  %989 = vrot.lane.b32.xlu0 %v987, 64
  %v990 = vpop.permute.xlu0 %989
  %v992 = vmul.f32 %v986, %v990
  %994 = vrot.lane.b32.xlu0 %v992, 64
  %v995 = vpop.permute.xlu0 %994
  %v997 = vadd.f32 %v489, %v995
  %v998 = vtanh.pop %v997
  %v999 = vsub.f32 1.0, %v986
  %1001 = vrot.lane.b32.xlu0 %v998, 96
  %v1002 = vpop.permute.xlu0 %1001
  %v1004 = vmul.f32 %v999, %v1002
  %v1005 = vmul.f32 %v986, %v941
  %v1006 = vadd.f32 %v1004, %v1005
  %vm1007 = vcmp.gt.f32.partialorder %v497, 0.0
  %v1008 = vsel %vm1007, 1, 0
  %1009 = vset.pattern.permute.xlu0 0
  %1010 = vperm.xlu0 %1009, %v1008
  %v1011 = vpop.permute.xlu0 %1010
  %vm1012 = vcmp.eq.s32.totalorder %v1011, 1
  %v1013 = vsel %vm1012, %v1006, %v941
  %1015 = vrot.lane.b32.xlu0 %v1013, 96
  %v1016 = vpop.permute.xlu0 %1015
  %v1017 = vsel %vm342, %v1016, 0
  %1019 = vmatpush.msra.mxu0 0.0
  %1020 = vmatpush.msra.mxu0 0.0
  %1021 = vmatpush.msra.mxu0 0.0
  %1022 = vmatpush.msra.mxu0 0.0
  %1023 = vmatpush.msra.mxu0 0.0
  %1024 = vmatpush.msra.mxu0 0.0
  %1025 = vmatpush.msra.mxu0 0.0
  %1026 = vmatpush.msra.mxu0 0.0
  %1027 = vmatpush.msra.mxu0 0.0
  %1028 = vmatpush.msra.mxu0 0.0
  %1029 = vmatpush.msra.mxu0 0.0
  %1030 = vmatpush.msra.mxu0 0.0
  %1031 = vmatpush.msra.mxu0 %v502
  %1032 = vmatpush.msra.mxu0 %v501
  %1033 = vmatpush.msra.mxu0 %v500
  %1034 = vmatpush.msra.mxu0 %v499
  %1035 = vmatmul.f32.gmra.mxu0 %v1017
  %v1036 = vpop.f32.mrf.mxu0
  %v1037 = vadd.f32 0.0, %v1036
  %1038 = vdwg.mxu0
  %v1039 = vadd.f32 %v490, %v1037
  %v1040 = vxor.u32 %v1039, 2147483648
  %v1041 = vmul.f32 %v1040, 1.442695
  %v1042 = vpow.pop %v1041
  %v1043 = vadd.f32 %v1042, 1.0
  %v1044 = vrcp.pop %v1043
  %v1045 = vmul.f32 %v1043, %v1044
  %v1046 = vsub.f32 1.0, %v1045
  %v1047 = vmul.f32 %v1044, %v1046
  %v1048 = vadd.f32 %v1044, %v1047
  %vm1049 = vweird.f32 %v1043
  %vm1050 = vweird.f32 %v1044
  %vm1051 = vmor %vm1049, %vm1050
  %v1052 = vsel %vm1051, %v1044, %v1048
  %v1053 = vand.u32 2147483647, %v1043
  %vm1054 = vcmp.eq.f32.partialorder %v1053, 8.507059e+37
  %v1055 = vand.u32 %v1043, 2147483648
  %v1056 = vor.u32 1.1754944e-38, %v1055
  %v1057 = vsel %vm1054, %v1056, %v1052
  %v1058 = vmul.f32 1.0, %v1057
  %v1059 = vadd.f32 %v1037, %v550
  %1061 = vrot.lane.b32.xlu0 %v1059, 64
  %v1062 = vpop.permute.xlu0 %1061
  %v1064 = vmul.f32 %v1058, %v1062
  %1066 = vrot.lane.b32.xlu0 %v1064, 64
  %v1067 = vpop.permute.xlu0 %1066
  %v1069 = vadd.f32 %v490, %v1067
  %v1070 = vtanh.pop %v1069
  %v1071 = vsub.f32 1.0, %v1058
  %1073 = vrot.lane.b32.xlu0 %v1070, 96
  %v1074 = vpop.permute.xlu0 %1073
  %v1076 = vmul.f32 %v1071, %v1074
  %v1077 = vmul.f32 %v1058, %v1013
  %v1078 = vadd.f32 %v1076, %v1077
  %vm1079 = vcmp.gt.f32.partialorder %v498, 0.0
  %v1080 = vsel %vm1079, 1, 0
  %1081 = vset.pattern.permute.xlu0 0
  %1082 = vperm.xlu0 %1081, %v1080
  %v1083 = vpop.permute.xlu0 %1082
  %vm1084 = vcmp.eq.s32.totalorder %v1083, 1
  %v1085 = vsel %vm1084, %v1078, %v1013
  %1087 = vst.sshfl [vmem:[#allocation1] sm:$0xff pattern:$0x73625140] %v1085
  %s1088 = scalar_lea.vmem [#allocation1], 1
  %v1089 = vld [vmem:[%s1088] ss:$4 sm:$0xff]
  %s1090 = scalar_lea.vmem [#allocation1], 2
  %v1091 = vld [vmem:[%s1090] ss:$4 sm:$0xff]
  %s1092 = scalar_lea.vmem [#allocation1], 3
  %v1093 = vld [vmem:[%s1092] ss:$4 sm:$0xff]
  %v1097 = vmul.f32 %v1089, %v1085
  %v1098 = vmul.f32 %v1091, %v1085
  %v1099 = vmul.f32 %v1093, %v1085
  %1103 = vst [vmem:[#allocation1] ss:$4 sm:$0xff] %v1097
  %v1104 = vld.sshfl [vmem:[#allocation1] sm:$0xff pattern:$0x73625140]
  %s1105 = scalar_lea.vmem [#allocation1], 32
  %1106 = vst [vmem:[%s1105] ss:$4 sm:$0xff] %v1098
  %v1107 = vld.sshfl [vmem:[#allocation1 + $0x20] sm:$0xff pattern:$0x73625140]
  %1108 = vst [vmem:[#allocation1] ss:$4 sm:$0xff] %v1099
  %v1109 = vld.sshfl [vmem:[#allocation1] sm:$0xff pattern:$0x73625140]
  %1110 = vrot.lane.b32.xlu0 %v1104, 96
  %v1111 = vpop.permute.xlu0 %1110
  %1112 = vrot.lane.b32.xlu0 %v1107, 96
  %v1113 = vpop.permute.xlu0 %1112
  %1114 = vrot.lane.b32.xlu0 %v1109, 96
  %v1115 = vpop.permute.xlu0 %1114
  %vm1119 = vcmask 254976
  %v1120 = vsel %vm1119, %v1111, 0.0
  %1121 = vadd.xlane.f32.xlu0 %v1120
  %v1122 = vpop.xlane.xlu0 %1121
  %v1123 = vsel %vm1119, %v1113, 0.0
  %1124 = vadd.xlane.f32.xlu0 %v1123
  %v1125 = vpop.xlane.xlu0 %1124
  %v1126 = vsel %vm1119, %v1115, 0.0
  %1127 = vadd.xlane.f32.xlu0 %v1126
  %v1128 = vpop.xlane.xlu0 %1127
  %v1129 = vmul.f32 %v1085, %v1085
  %1131 = vrot.lane.b32.xlu0 %v1129, 96
  %v1132 = vpop.permute.xlu0 %1131
  %v1134 = vsel %vm1119, %v1132, 0.0
  %1135 = vadd.xlane.f32.xlu0 %v1134
  %v1136 = vpop.xlane.xlu0 %1135
  %v1137 = vrsqrt.pop %v1136
  %v1138 = vmul.f32 %v1137, %v1136
  %v1139 = vmul.f32 %v1138, %v1137
  %v1140 = vmul.f32 0.5, %v1139
  %v1141 = vsub.f32 1.5, %v1140
  %v1142 = vmul.f32 %v1137, %v1141
  %v1143 = vmul.f32 %v1136, %v1142
  %vm1144 = vcmp.eq.f32.partialorder %v1136, inf
  %v1145 = vsel %vm1144, %v1136, %v1143
  %vm1146 = vcmp.eq.f32.partialorder %v1136, 0.0
  %v1147 = vand.u32 %v1136, 2147483648
  %v1148 = vsel %vm1146, %v1147, %v1145
  %v1149 = vmax.f32 %v1148, 1e-08
  %v1150 = vmul.f32 %v1089, %v1089
  %v1151 = vmul.f32 %v1091, %v1091
  %v1152 = vmul.f32 %v1093, %v1093
  %1156 = vst [vmem:[#allocation1] ss:$4 sm:$0xff] %v1150
  %v1157 = vld.sshfl [vmem:[#allocation1] sm:$0xff pattern:$0x73625140]
  %s1158 = scalar_lea.vmem [#allocation1], 32
  %1159 = vst [vmem:[%s1158] ss:$4 sm:$0xff] %v1151
  %v1160 = vld.sshfl [vmem:[#allocation1 + $0x20] sm:$0xff pattern:$0x73625140]
  %1161 = vst [vmem:[#allocation1] ss:$4 sm:$0xff] %v1152
  %v1162 = vld.sshfl [vmem:[#allocation1] sm:$0xff pattern:$0x73625140]
  %1163 = vrot.lane.b32.xlu0 %v1157, 96
  %v1164 = vpop.permute.xlu0 %1163
  %1165 = vrot.lane.b32.xlu0 %v1160, 96
  %v1166 = vpop.permute.xlu0 %1165
  %1167 = vrot.lane.b32.xlu0 %v1162, 96
  %v1168 = vpop.permute.xlu0 %1167
  %v1172 = vsel %vm1119, %v1164, 0.0
  %1173 = vadd.xlane.f32.xlu0 %v1172
  %v1174 = vpop.xlane.xlu0 %1173
  %v1175 = vsel %vm1119, %v1166, 0.0
  %1176 = vadd.xlane.f32.xlu0 %v1175
  %v1177 = vpop.xlane.xlu0 %1176
  %v1178 = vsel %vm1119, %v1168, 0.0
  %1179 = vadd.xlane.f32.xlu0 %v1178
  %v1180 = vpop.xlane.xlu0 %1179
  %v1181 = vrsqrt.pop %v1174
  %v1182 = vmul.f32 %v1181, %v1174
  %v1183 = vmul.f32 %v1182, %v1181
  %v1184 = vmul.f32 0.5, %v1183
  %v1185 = vsub.f32 1.5, %v1184
  %v1186 = vmul.f32 %v1181, %v1185
  %v1187 = vmul.f32 %v1174, %v1186
  %vm1188 = vcmp.eq.f32.partialorder %v1174, inf
  %v1189 = vsel %vm1188, %v1174, %v1187
  %vm1190 = vcmp.eq.f32.partialorder %v1174, 0.0
  %v1191 = vand.u32 %v1174, 2147483648
  %v1192 = vsel %vm1190, %v1191, %v1189
  %v1193 = vrsqrt.pop %v1177
  %v1194 = vmul.f32 %v1193, %v1177
  %v1195 = vmul.f32 %v1194, %v1193
  %v1196 = vmul.f32 0.5, %v1195
  %v1197 = vsub.f32 1.5, %v1196
  %v1198 = vmul.f32 %v1193, %v1197
  %v1199 = vmul.f32 %v1177, %v1198
  %vm1200 = vcmp.eq.f32.partialorder %v1177, inf
  %v1201 = vsel %vm1200, %v1177, %v1199
  %vm1202 = vcmp.eq.f32.partialorder %v1177, 0.0
  %v1203 = vand.u32 %v1177, 2147483648
  %v1204 = vsel %vm1202, %v1203, %v1201
  %v1205 = vrsqrt.pop %v1180
  %v1206 = vmul.f32 %v1205, %v1180
  %v1207 = vmul.f32 %v1206, %v1205
  %v1208 = vmul.f32 0.5, %v1207
  %v1209 = vsub.f32 1.5, %v1208
  %v1210 = vmul.f32 %v1205, %v1209
  %v1211 = vmul.f32 %v1180, %v1210
  %vm1212 = vcmp.eq.f32.partialorder %v1180, inf
  %v1213 = vsel %vm1212, %v1180, %v1211
  %vm1214 = vcmp.eq.f32.partialorder %v1180, 0.0
  %v1215 = vand.u32 %v1180, 2147483648
  %v1216 = vsel %vm1214, %v1215, %v1213
  %v1217 = vmax.f32 %v1192, 1e-08
  %v1218 = vmax.f32 %v1204, 1e-08
  %v1219 = vmax.f32 %v1216, 1e-08
  %v1220 = vmul.f32 %v1149, %v1217
  %v1221 = vmul.f32 %v1149, %v1218
  %v1222 = vmul.f32 %v1149, %v1219
  %v1223 = vrcp.pop %v1220
  %v1224 = vmul.f32 %v1220, %v1223
  %v1225 = vsub.f32 1.0, %v1224
  %v1226 = vmul.f32 %v1223, %v1225
  %v1227 = vadd.f32 %v1223, %v1226
  %vm1228 = vweird.f32 %v1220
  %vm1229 = vweird.f32 %v1223
  %vm1230 = vmor %vm1228, %vm1229
  %v1231 = vsel %vm1230, %v1223, %v1227
  %v1232 = vand.u32 2147483647, %v1220
  %vm1233 = vcmp.eq.f32.partialorder %v1232, 8.507059e+37
  %v1234 = vand.u32 %v1220, 2147483648
  %v1235 = vor.u32 1.1754944e-38, %v1234
  %v1236 = vsel %vm1233, %v1235, %v1231
  %v1237 = vmul.f32 %v1122, %v1236
  %v1238 = vrcp.pop %v1221
  %v1239 = vmul.f32 %v1221, %v1238
  %v1240 = vsub.f32 1.0, %v1239
  %v1241 = vmul.f32 %v1238, %v1240
  %v1242 = vadd.f32 %v1238, %v1241
  %vm1243 = vweird.f32 %v1221
  %vm1244 = vweird.f32 %v1238
  %vm1245 = vmor %vm1243, %vm1244
  %v1246 = vsel %vm1245, %v1238, %v1242
  %v1247 = vand.u32 2147483647, %v1221
  %vm1248 = vcmp.eq.f32.partialorder %v1247, 8.507059e+37
  %v1249 = vand.u32 %v1221, 2147483648
  %v1250 = vor.u32 1.1754944e-38, %v1249
  %v1251 = vsel %vm1248, %v1250, %v1246
  %v1252 = vmul.f32 %v1125, %v1251
  %v1253 = vrcp.pop %v1222
  %v1254 = vmul.f32 %v1222, %v1253
  %v1255 = vsub.f32 1.0, %v1254
  %v1256 = vmul.f32 %v1253, %v1255
  %v1257 = vadd.f32 %v1253, %v1256
  %vm1258 = vweird.f32 %v1222
  %vm1259 = vweird.f32 %v1253
  %vm1260 = vmor %vm1258, %vm1259
  %v1261 = vsel %vm1260, %v1253, %v1257
  %v1262 = vand.u32 2147483647, %v1222
  %vm1263 = vcmp.eq.f32.partialorder %v1262, 8.507059e+37
  %v1264 = vand.u32 %v1222, 2147483648
  %v1265 = vor.u32 1.1754944e-38, %v1264
  %v1266 = vsel %vm1263, %v1265, %v1261
  %v1267 = vmul.f32 %v1128, %v1266
  %v1271 = vlaneseq
  %v1272 = vand.u32 %v1271, 127
  %v1273 = vperm.slane %v1237, %v1272
  %v1274 = vperm.slane %v1252, %v1272
  %v1275 = vperm.slane %v1267, %v1272
  %vm1276 = vcmask 1041409
  %v1277 = vsel %vm1276, %v1274, %v1273
  %vm1278 = vcmask 1042434
  %v1279 = vsel %vm1278, %v1275, %v1277
  %vm1281 = vcmask 10240
  %1282 = vst.msk [vmem:[%s9] sm:$0x7] %vm1281, %v1279
  // Predicated region
  $region38: #{tpu_custom_call.1} parent=0 // pred_check
    _
  $region39: #{tpu_custom_call.1} parent=0 // pred_check_branch
    %1284 = sbr.rel (0) target = $region41
  $region40: #{tpu_custom_call.1} parent=0 // pred_region
    _
  $region41: #{tpu_custom_call.1} parent=0 // pred_fallthru
    _
  // Predicated region
  $region42: #{tpu_custom_call.1} parent=0 // pred_check
    _
  $region43: #{tpu_custom_call.1} parent=0 // pred_check_branch
    %1286 = sbr.rel (0) target = $region45
  $region44: #{tpu_custom_call.1} parent=0 // pred_region
    _
  $region45: #{tpu_custom_call.1} parent=0 // pred_fallthru
    _

</llo_original>
